<compile_context>
chip_gen: v5e
topology: v5e:2x2
jax: 0.10.0
libtpu: 0.0.40
codegen_flags: <defaults>
</compile_context>

<pallas_src>
import math

import jax
import jax.numpy as jnp
from jax.experimental import pallas as pl
from jax.experimental.pallas import tpu as pltpu


# ---------------------------------------------------------------------------
# Fused MHA kernel: one batch element per grid step, all heads in-step.
# ---------------------------------------------------------------------------
def _make_fused_mha_kernel(num_heads, has_mask):
    def kernel(xq_ref, xk_ref, xv_ref,
               wq_ref, bq_ref, wk_ref, bk_ref, wv_ref, bv_ref,
               wo_ref, bo_ref, *rest):
        if has_mask:
            maskb_ref, o_ref = rest
        else:
            (o_ref,) = rest

        f32, bf16 = jnp.float32, jnp.bfloat16
        d_model = xq_ref.shape[-1]
        d_k = d_model // num_heads
        scale = 1.0 / math.sqrt(d_k)

        # --- Q/K/V projections: bf16 operands on the MXU, f32 accumulation ---
        q = jnp.dot(xq_ref[...].astype(bf16), wq_ref[...],
                    preferred_element_type=f32) + bq_ref[...]
        k = jnp.dot(xk_ref[...].astype(bf16), wk_ref[...],
                    preferred_element_type=f32) + bk_ref[...]
        v = jnp.dot(xv_ref[...].astype(bf16), wv_ref[...],
                    preferred_element_type=f32) + bv_ref[...]

        wo = wo_ref[...]                        # (d_model, d_model) bf16, resident
        if has_mask:
            mask_bias = maskb_ref[...]          # (Sq, Sk) f32, already * -1e9

        # --- per-head attention, fused with the output projection ---
        # out = sum_h ctx_h @ Wo^T[h*d_k:(h+1)*d_k, :]  (== concat-then-matmul)
        out_acc = None
        for h in range(num_heads):              # static unrolled loop (H small)
            lo, hi = h * d_k, (h + 1) * d_k
            q_h = q[:, lo:hi].astype(bf16)
            k_h = k[:, lo:hi].astype(bf16)
            v_h = v[:, lo:hi].astype(bf16)

            # scores = q_h k_h^T / sqrt(d_k)   (contract last dims, no transpose)
            s = jax.lax.dot_general(q_h, k_h, (((1,), (1,)), ((), ())),
                                    preferred_element_type=f32) * scale
            if has_mask:
                s = s + mask_bias               # additive mask, exactly like PyTorch

            m = jnp.max(s, axis=-1, keepdims=True)
            e = jnp.exp(s - m)
            denom = jnp.sum(e, axis=-1, keepdims=True)
            p = e * pl.reciprocal(denom, approx=True)     # EUP divide

            ctx_h = jnp.dot(p.astype(bf16), v_h, preferred_element_type=f32)
            part = jnp.dot(ctx_h.astype(bf16), wo[lo:hi, :],
                           preferred_element_type=f32)
            out_acc = part if out_acc is None else out_acc + part

        o_ref[...] = (out_acc + bo_ref[...]).astype(o_ref.dtype)

    return kernel


# ---------------------------------------------------------------------------
# Full module forward
# ---------------------------------------------------------------------------
def multi_headed_attention(query, key, value,
                           wq_t, bq, wk_t, bk, wv_t, bv, wo_t, bo,
                           num_heads, mask=None):
    """query/key/value: (B, S, d_model). Weights pre-transposed (d_model, d_model)."""
    B, Sq, d_model = query.shape
    Sk = key.shape[1]
    assert d_model % num_heads == 0

    f32, bf16 = jnp.float32, jnp.bfloat16

    # Weights become bf16 MXU operands (tiny one-time casts); biases f32 (1, D).
    wq_b, wk_b, wv_b, wo_b = (w.astype(bf16) for w in (wq_t, wk_t, wv_t, wo_t))
    bq2, bk2, bv2, bo2 = (b.reshape(1, d_model).astype(f32)
                          for b in (bq, bk, bv, bo))

    has_mask = mask is not None
    kernel = _make_fused_mha_kernel(num_heads, has_mask)

    in_specs = [
        pl.BlockSpec((None, Sq, d_model), lambda b: (b, 0, 0)),   # x_q
        pl.BlockSpec((None, Sk, d_model), lambda b: (b, 0, 0)),   # x_k
        pl.BlockSpec((None, Sk, d_model), lambda b: (b, 0, 0)),   # x_v
        pl.BlockSpec((d_model, d_model), lambda b: (0, 0)),       # Wq^T (resident)
        pl.BlockSpec((1, d_model), lambda b: (0, 0)),             # bq
        pl.BlockSpec((d_model, d_model), lambda b: (0, 0)),       # Wk^T
        pl.BlockSpec((1, d_model), lambda b: (0, 0)),             # bk
        pl.BlockSpec((d_model, d_model), lambda b: (0, 0)),       # Wv^T
        pl.BlockSpec((1, d_model), lambda b: (0, 0)),             # bv
        pl.BlockSpec((d_model, d_model), lambda b: (0, 0)),       # Wo^T
        pl.BlockSpec((1, d_model), lambda b: (0, 0)),             # bo
    ]
    args = [query, key, value, wq_b, bq2, wk_b, bk2, wv_b, bv2, wo_b, bo2]

    if has_mask:
        # Fold the -1e9 once; shared across heads (PyTorch's mask.unsqueeze(1)).
        mask_bias = mask.astype(f32).reshape(B, Sq, Sk) * (-1e9)
        in_specs.append(pl.BlockSpec((None, Sq, Sk), lambda b: (b, 0, 0)))
        args.append(mask_bias)

    flops = int(B * (2 * d_model * d_model * (Sq + 2 * Sk)   # Q/K/V projections
                     + 4 * Sq * Sk * d_model                 # QK^T + PV (all heads)
                     + 2 * Sq * d_model * d_model))          # output projection
    bytes_accessed = int(
        4 * B * (Sq + 2 * Sk) * d_model                      # activations in (f32)
        + 4 * 2 * d_model * d_model                          # bf16 weights
        + 4 * 4 * d_model                                    # biases
        + (4 * B * Sq * Sk if has_mask else 0)               # mask bias
        + 4 * B * Sq * d_model)                              # output

    return pl.pallas_call(
        kernel,
        out_shape=jax.ShapeDtypeStruct((B, Sq, d_model), query.dtype),
        grid_spec=pltpu.PrefetchScalarGridSpec(
            num_scalar_prefetch=0,
            grid=(B,),
            in_specs=in_specs,
            out_specs=pl.BlockSpec((None, Sq, d_model), lambda b: (b, 0, 0)),
        ),
        compiler_params=pltpu.CompilerParams(
            dimension_semantics=("parallel",)),
        cost_estimate=pl.CostEstimate(
            flops=flops,
            transcendentals=int(B * num_heads * Sq * Sk),
            bytes_accessed=bytes_accessed),
    )(*args)


# ---------------------------------------------------------------------------
# Reference (plain JAX, f32) + self-test
# ---------------------------------------------------------------------------
def _reference_mha(query, key, value, wq_t, bq, wk_t, bk, wv_t, bv, wo_t, bo,
                   num_heads, mask):
    B, Sq, d_model = query.shape
    Sk = key.shape[1]
    d_k = d_model // num_heads
    q = (query @ wq_t + bq).reshape(B, Sq, num_heads, d_k).transpose(0, 2, 1, 3)
    k = (key @ wk_t + bk).reshape(B, Sk, num_heads, d_k).transpose(0, 2, 1, 3)
    v = (value @ wv_t + bv).reshape(B, Sk, num_heads, d_k).transpose(0, 2, 1, 3)
    scores = jnp.einsum("bhqd,bhkd->bhqk", q, k) / math.sqrt(d_k)
    if mask is not None:
        scores = scores + mask[:, None, :, :] * (-1e9)
    p = jax.nn.softmax(scores, axis=-1)
    ctx = jnp.einsum("bhqk,bhkd->bhqd", p, v)
    ctx = ctx.transpose(0, 2, 1, 3).reshape(B, Sq, d_model)
    return ctx @ wo_t + bo


if __name__ == "__main__":
    # Small shapes consistent with the module: batch=2, seq=8, d_model=32, heads=4
    batch, seq, d_model, num_heads = 2, 8, 32, 4

    key0 = jax.random.PRNGKey(0)
    keys = jax.random.split(key0, 12)

    query = jax.random.normal(keys[0], (batch, seq, d_model), dtype=jnp.float32)
    key_in = jax.random.normal(keys[1], (batch, seq, d_model), dtype=jnp.float32)
    value = jax.random.normal(keys[2], (batch, seq, d_model), dtype=jnp.float32)

    # PyTorch-like uniform init in +-1/sqrt(fan_in); weights stored pre-transposed.
    bound = 1.0 / (d_model ** 0.5)

    def init_linear(kw, kb):
        w_t = jax.random.uniform(kw, (d_model, d_model), jnp.float32, -bound, bound)
        b = jax.random.uniform(kb, (d_model,), jnp.float32, -bound, bound)
        return w_t, b

    wq_t, bq = init_linear(keys[3], keys[4])
    wk_t, bk = init_linear(keys[5], keys[6])
    wv_t, bv = init_linear(keys[7], keys[8])
    wo_t, bo = init_linear(keys[9], keys[10])

    # Causal-style additive mask (1 = masked future position), shape (B, Sq, Sk).
    mask = jnp.broadcast_to(jnp.triu(jnp.ones((seq, seq), jnp.float32), k=1),
                            (batch, seq, seq))

    # --- masked path ---
    out = multi_headed_attention(query, key_in, value,
                                 wq_t, bq, wk_t, bk, wv_t, bv, wo_t, bo,
                                 num_heads, mask=mask)
    out = jax.block_until_ready(out)
    ref_out = _reference_mha(query, key_in, value,
                             wq_t, bq, wk_t, bk, wv_t, bv, wo_t, bo,
                             num_heads, mask)
    assert out.shape == (batch, seq, d_model)
    # bf16 MXU operands (f32 accumulation) vs. f32 reference -> loosened tolerance.
    assert jnp.allclose(out, ref_out, atol=3e-2, rtol=3e-2), \
        f"masked mismatch: max abs diff {jnp.max(jnp.abs(out - ref_out))}"

    # --- mask=None path (no mask array allocated or DMA'd at all) ---
    out_nm = multi_headed_attention(query, key_in, value,
                                    wq_t, bq, wk_t, bk, wv_t, bv, wo_t, bo,
                                    num_heads, mask=None)
    out_nm = jax.block_until_ready(out_nm)
    ref_nm = _reference_mha(query, key_in, value,
                            wq_t, bq, wk_t, bk, wv_t, bv, wo_t, bo,
                            num_heads, None)
    assert jnp.allclose(out_nm, ref_nm, atol=3e-2, rtol=3e-2), \
        f"unmasked mismatch: max abs diff {jnp.max(jnp.abs(out_nm - ref_nm))}"

    print("KERNEL_OK")
</pallas_src>

<mosaic_0001>
module attributes {stable_mosaic.version = 11 : i64} {
  func.func @kernel(%arg0: i32, %arg1: memref<1x8x32xf32, #tpu.memory_space<vmem>>, %arg2: memref<1x8x32xf32, #tpu.memory_space<vmem>>, %arg3: memref<1x8x32xf32, #tpu.memory_space<vmem>>, %arg4: memref<32x32xbf16, #tpu.memory_space<vmem>>, %arg5: memref<1x32xf32, #tpu.memory_space<vmem>>, %arg6: memref<32x32xbf16, #tpu.memory_space<vmem>>, %arg7: memref<1x32xf32, #tpu.memory_space<vmem>>, %arg8: memref<32x32xbf16, #tpu.memory_space<vmem>>, %arg9: memref<1x32xf32, #tpu.memory_space<vmem>>, %arg10: memref<32x32xbf16, #tpu.memory_space<vmem>>, %arg11: memref<1x32xf32, #tpu.memory_space<vmem>>, %arg12: memref<1x8x8xf32, #tpu.memory_space<vmem>>, %arg13: memref<1x8x32xf32, #tpu.memory_space<vmem>>) attributes {dimension_semantics = [#tpu.dimension_semantics<parallel>], iteration_bounds = array<i64: 2>, scalar_prefetch = 0 : i64, scratch_operands = 0 : i64, tpu.core_type = #tpu.core_type<tc>, window_params = [{transform_indices = @transform_0, window_bounds = array<i64: 1, 8, 32>}, {transform_indices = @transform_1, window_bounds = array<i64: 1, 8, 32>}, {transform_indices = @transform_2, window_bounds = array<i64: 1, 8, 32>}, {pipeline_mode = #tpu.pipeline_mode<synchronous>, transform_indices = @transform_3, window_bounds = array<i64: 32, 32>}, {pipeline_mode = #tpu.pipeline_mode<synchronous>, transform_indices = @transform_4, window_bounds = array<i64: 1, 32>}, {pipeline_mode = #tpu.pipeline_mode<synchronous>, transform_indices = @transform_5, window_bounds = array<i64: 32, 32>}, {pipeline_mode = #tpu.pipeline_mode<synchronous>, transform_indices = @transform_6, window_bounds = array<i64: 1, 32>}, {pipeline_mode = #tpu.pipeline_mode<synchronous>, transform_indices = @transform_7, window_bounds = array<i64: 32, 32>}, {pipeline_mode = #tpu.pipeline_mode<synchronous>, transform_indices = @transform_8, window_bounds = array<i64: 1, 32>}, {pipeline_mode = #tpu.pipeline_mode<synchronous>, transform_indices = @transform_9, window_bounds = array<i64: 32, 32>}, {pipeline_mode = #tpu.pipeline_mode<synchronous>, transform_indices = @transform_10, window_bounds = array<i64: 1, 32>}, {transform_indices = @transform_11, window_bounds = array<i64: 1, 8, 8>}, {transform_indices = @transform_12, window_bounds = array<i64: 1, 8, 32>}]} {
    %c0 = arith.constant 0 : index
    %c0_0 = arith.constant 0 : index
    %c0_1 = arith.constant 0 : index
    %0 = vector.load %arg1[%c0, %c0_0, %c0_1] : memref<1x8x32xf32, #tpu.memory_space<vmem>>, vector<1x8x32xf32>
    %1 = vector.shape_cast %0 : vector<1x8x32xf32> to vector<8x32xf32>
    %2 = arith.truncf %1 : vector<8x32xf32> to vector<8x32xbf16>
    %c0_2 = arith.constant 0 : index
    %c0_3 = arith.constant 0 : index
    %3 = vector.load %arg4[%c0_2, %c0_3] : memref<32x32xbf16, #tpu.memory_space<vmem>>, vector<32x32xbf16>
    %cst = arith.constant dense<0.000000e+00> : vector<8x32xf32>
    %4 = tpu.matmul %2, %3, %cst {dimension_numbers = #tpu.dot_dimension_numbers<[1], [0], [0], [1], [0, 0, 1, 1], [], []>} : vector<8x32xbf16>, vector<32x32xbf16>, vector<8x32xf32> -> vector<8x32xf32>
    %c0_4 = arith.constant 0 : index
    %c0_5 = arith.constant 0 : index
    %5 = vector.load %arg5[%c0_4, %c0_5] : memref<1x32xf32, #tpu.memory_space<vmem>>, vector<1x32xf32>
    %6 = vector.broadcast %5 : vector<1x32xf32> to vector<8x32xf32>
    %7 = arith.addf %4, %6 : vector<8x32xf32>
    %c0_6 = arith.constant 0 : index
    %c0_7 = arith.constant 0 : index
    %c0_8 = arith.constant 0 : index
    %8 = vector.load %arg2[%c0_6, %c0_7, %c0_8] : memref<1x8x32xf32, #tpu.memory_space<vmem>>, vector<1x8x32xf32>
    %9 = vector.shape_cast %8 : vector<1x8x32xf32> to vector<8x32xf32>
    %10 = arith.truncf %9 : vector<8x32xf32> to vector<8x32xbf16>
    %c0_9 = arith.constant 0 : index
    %c0_10 = arith.constant 0 : index
    %11 = vector.load %arg6[%c0_9, %c0_10] : memref<32x32xbf16, #tpu.memory_space<vmem>>, vector<32x32xbf16>
    %cst_11 = arith.constant dense<0.000000e+00> : vector<8x32xf32>
    %12 = tpu.matmul %10, %11, %cst_11 {dimension_numbers = #tpu.dot_dimension_numbers<[1], [0], [0], [1], [0, 0, 1, 1], [], []>} : vector<8x32xbf16>, vector<32x32xbf16>, vector<8x32xf32> -> vector<8x32xf32>
    %c0_12 = arith.constant 0 : index
    %c0_13 = arith.constant 0 : index
    %13 = vector.load %arg7[%c0_12, %c0_13] : memref<1x32xf32, #tpu.memory_space<vmem>>, vector<1x32xf32>
    %14 = vector.broadcast %13 : vector<1x32xf32> to vector<8x32xf32>
    %15 = arith.addf %12, %14 : vector<8x32xf32>
    %c0_14 = arith.constant 0 : index
    %c0_15 = arith.constant 0 : index
    %c0_16 = arith.constant 0 : index
    %16 = vector.load %arg3[%c0_14, %c0_15, %c0_16] : memref<1x8x32xf32, #tpu.memory_space<vmem>>, vector<1x8x32xf32>
    %17 = vector.shape_cast %16 : vector<1x8x32xf32> to vector<8x32xf32>
    %18 = arith.truncf %17 : vector<8x32xf32> to vector<8x32xbf16>
    %c0_17 = arith.constant 0 : index
    %c0_18 = arith.constant 0 : index
    %19 = vector.load %arg8[%c0_17, %c0_18] : memref<32x32xbf16, #tpu.memory_space<vmem>>, vector<32x32xbf16>
    %cst_19 = arith.constant dense<0.000000e+00> : vector<8x32xf32>
    %20 = tpu.matmul %18, %19, %cst_19 {dimension_numbers = #tpu.dot_dimension_numbers<[1], [0], [0], [1], [0, 0, 1, 1], [], []>} : vector<8x32xbf16>, vector<32x32xbf16>, vector<8x32xf32> -> vector<8x32xf32>
    %c0_20 = arith.constant 0 : index
    %c0_21 = arith.constant 0 : index
    %21 = vector.load %arg9[%c0_20, %c0_21] : memref<1x32xf32, #tpu.memory_space<vmem>>, vector<1x32xf32>
    %22 = vector.broadcast %21 : vector<1x32xf32> to vector<8x32xf32>
    %23 = arith.addf %20, %22 : vector<8x32xf32>
    %c0_22 = arith.constant 0 : index
    %c0_23 = arith.constant 0 : index
    %24 = vector.load %arg10[%c0_22, %c0_23] : memref<32x32xbf16, #tpu.memory_space<vmem>>, vector<32x32xbf16>
    %c0_24 = arith.constant 0 : index
    %c0_25 = arith.constant 0 : index
    %c0_26 = arith.constant 0 : index
    %25 = vector.load %arg12[%c0_24, %c0_25, %c0_26] : memref<1x8x8xf32, #tpu.memory_space<vmem>>, vector<1x8x8xf32>
    %26 = vector.shape_cast %25 : vector<1x8x8xf32> to vector<8x8xf32>
    %27 = vector.extract_strided_slice %7 {offsets = [0, 0], sizes = [8, 8], strides = [1, 1]} : vector<8x32xf32> to vector<8x8xf32>
    %28 = arith.truncf %27 : vector<8x8xf32> to vector<8x8xbf16>
    %29 = vector.extract_strided_slice %15 {offsets = [0, 0], sizes = [8, 8], strides = [1, 1]} : vector<8x32xf32> to vector<8x8xf32>
    %30 = arith.truncf %29 : vector<8x8xf32> to vector<8x8xbf16>
    %31 = vector.extract_strided_slice %23 {offsets = [0, 0], sizes = [8, 8], strides = [1, 1]} : vector<8x32xf32> to vector<8x8xf32>
    %32 = arith.truncf %31 : vector<8x8xf32> to vector<8x8xbf16>
    %cst_27 = arith.constant dense<0.000000e+00> : vector<8x8xf32>
    %33 = tpu.matmul %28, %30, %cst_27 {dimension_numbers = #tpu.dot_dimension_numbers<[1], [1], [0], [0], [0, 0, 1, 0], [], []>} : vector<8x8xbf16>, vector<8x8xbf16>, vector<8x8xf32> -> vector<8x8xf32>
    %cst_28 = arith.constant 0.353553385 : f32
    %34 = vector.broadcast %cst_28 : f32 to vector<8x8xf32>
    %35 = arith.mulf %33, %34 : vector<8x8xf32>
    %36 = arith.addf %35, %26 : vector<8x8xf32>
    %cst_29 = arith.constant dense<0xFF800000> : vector<8xf32>
    %37 = vector.multi_reduction <maximumf>, %36, %cst_29 [1] : vector<8x8xf32> to vector<8xf32>
    %38 = vector.shape_cast %37 : vector<8xf32> to vector<8x1xf32>
    %39 = vector.broadcast %38 : vector<8x1xf32> to vector<8x8xf32>
    %40 = arith.subf %36, %39 : vector<8x8xf32>
    %41 = math.exp %40 : vector<8x8xf32>
    %cst_30 = arith.constant dense<0.000000e+00> : vector<8xf32>
    %42 = vector.multi_reduction <add>, %41, %cst_30 [1] : vector<8x8xf32> to vector<8xf32>
    %43 = vector.shape_cast %42 : vector<8xf32> to vector<8x1xf32>
    %44 = tpu.reciprocal %43 {approx = true} : vector<8x1xf32> -> vector<8x1xf32>
    %45 = vector.broadcast %44 : vector<8x1xf32> to vector<8x8xf32>
    %46 = arith.mulf %41, %45 : vector<8x8xf32>
    %47 = arith.truncf %46 : vector<8x8xf32> to vector<8x8xbf16>
    %cst_31 = arith.constant dense<0.000000e+00> : vector<8x8xf32>
    %48 = tpu.matmul %47, %32, %cst_31 {dimension_numbers = #tpu.dot_dimension_numbers<[1], [0], [0], [1], [0, 0, 1, 1], [], []>} : vector<8x8xbf16>, vector<8x8xbf16>, vector<8x8xf32> -> vector<8x8xf32>
    %49 = arith.truncf %48 : vector<8x8xf32> to vector<8x8xbf16>
    %50 = vector.extract_strided_slice %24 {offsets = [0, 0], sizes = [8, 32], strides = [1, 1]} : vector<32x32xbf16> to vector<8x32xbf16>
    %cst_32 = arith.constant dense<0.000000e+00> : vector<8x32xf32>
    %51 = tpu.matmul %49, %50, %cst_32 {dimension_numbers = #tpu.dot_dimension_numbers<[1], [0], [0], [1], [0, 0, 1, 1], [], []>} : vector<8x8xbf16>, vector<8x32xbf16>, vector<8x32xf32> -> vector<8x32xf32>
    %52 = vector.extract_strided_slice %7 {offsets = [0, 8], sizes = [8, 8], strides = [1, 1]} : vector<8x32xf32> to vector<8x8xf32>
    %53 = arith.truncf %52 : vector<8x8xf32> to vector<8x8xbf16>
    %54 = vector.extract_strided_slice %15 {offsets = [0, 8], sizes = [8, 8], strides = [1, 1]} : vector<8x32xf32> to vector<8x8xf32>
    %55 = arith.truncf %54 : vector<8x8xf32> to vector<8x8xbf16>
    %56 = vector.extract_strided_slice %23 {offsets = [0, 8], sizes = [8, 8], strides = [1, 1]} : vector<8x32xf32> to vector<8x8xf32>
    %57 = arith.truncf %56 : vector<8x8xf32> to vector<8x8xbf16>
    %cst_33 = arith.constant dense<0.000000e+00> : vector<8x8xf32>
    %58 = tpu.matmul %53, %55, %cst_33 {dimension_numbers = #tpu.dot_dimension_numbers<[1], [1], [0], [0], [0, 0, 1, 0], [], []>} : vector<8x8xbf16>, vector<8x8xbf16>, vector<8x8xf32> -> vector<8x8xf32>
    %cst_34 = arith.constant 0.353553385 : f32
    %59 = vector.broadcast %cst_34 : f32 to vector<8x8xf32>
    %60 = arith.mulf %58, %59 : vector<8x8xf32>
    %61 = arith.addf %60, %26 : vector<8x8xf32>
    %cst_35 = arith.constant dense<0xFF800000> : vector<8xf32>
    %62 = vector.multi_reduction <maximumf>, %61, %cst_35 [1] : vector<8x8xf32> to vector<8xf32>
    %63 = vector.shape_cast %62 : vector<8xf32> to vector<8x1xf32>
    %64 = vector.broadcast %63 : vector<8x1xf32> to vector<8x8xf32>
    %65 = arith.subf %61, %64 : vector<8x8xf32>
    %66 = math.exp %65 : vector<8x8xf32>
    %cst_36 = arith.constant dense<0.000000e+00> : vector<8xf32>
    %67 = vector.multi_reduction <add>, %66, %cst_36 [1] : vector<8x8xf32> to vector<8xf32>
    %68 = vector.shape_cast %67 : vector<8xf32> to vector<8x1xf32>
    %69 = tpu.reciprocal %68 {approx = true} : vector<8x1xf32> -> vector<8x1xf32>
    %70 = vector.broadcast %69 : vector<8x1xf32> to vector<8x8xf32>
    %71 = arith.mulf %66, %70 : vector<8x8xf32>
    %72 = arith.truncf %71 : vector<8x8xf32> to vector<8x8xbf16>
    %cst_37 = arith.constant dense<0.000000e+00> : vector<8x8xf32>
    %73 = tpu.matmul %72, %57, %cst_37 {dimension_numbers = #tpu.dot_dimension_numbers<[1], [0], [0], [1], [0, 0, 1, 1], [], []>} : vector<8x8xbf16>, vector<8x8xbf16>, vector<8x8xf32> -> vector<8x8xf32>
    %74 = arith.truncf %73 : vector<8x8xf32> to vector<8x8xbf16>
    %75 = vector.extract_strided_slice %24 {offsets = [8, 0], sizes = [8, 32], strides = [1, 1]} : vector<32x32xbf16> to vector<8x32xbf16>
    %cst_38 = arith.constant dense<0.000000e+00> : vector<8x32xf32>
    %76 = tpu.matmul %74, %75, %cst_38 {dimension_numbers = #tpu.dot_dimension_numbers<[1], [0], [0], [1], [0, 0, 1, 1], [], []>} : vector<8x8xbf16>, vector<8x32xbf16>, vector<8x32xf32> -> vector<8x32xf32>
    %77 = arith.addf %51, %76 : vector<8x32xf32>
    %78 = vector.extract_strided_slice %7 {offsets = [0, 16], sizes = [8, 8], strides = [1, 1]} : vector<8x32xf32> to vector<8x8xf32>
    %79 = arith.truncf %78 : vector<8x8xf32> to vector<8x8xbf16>
    %80 = vector.extract_strided_slice %15 {offsets = [0, 16], sizes = [8, 8], strides = [1, 1]} : vector<8x32xf32> to vector<8x8xf32>
    %81 = arith.truncf %80 : vector<8x8xf32> to vector<8x8xbf16>
    %82 = vector.extract_strided_slice %23 {offsets = [0, 16], sizes = [8, 8], strides = [1, 1]} : vector<8x32xf32> to vector<8x8xf32>
    %83 = arith.truncf %82 : vector<8x8xf32> to vector<8x8xbf16>
    %cst_39 = arith.constant dense<0.000000e+00> : vector<8x8xf32>
    %84 = tpu.matmul %79, %81, %cst_39 {dimension_numbers = #tpu.dot_dimension_numbers<[1], [1], [0], [0], [0, 0, 1, 0], [], []>} : vector<8x8xbf16>, vector<8x8xbf16>, vector<8x8xf32> -> vector<8x8xf32>
    %cst_40 = arith.constant 0.353553385 : f32
    %85 = vector.broadcast %cst_40 : f32 to vector<8x8xf32>
    %86 = arith.mulf %84, %85 : vector<8x8xf32>
    %87 = arith.addf %86, %26 : vector<8x8xf32>
    %cst_41 = arith.constant dense<0xFF800000> : vector<8xf32>
    %88 = vector.multi_reduction <maximumf>, %87, %cst_41 [1] : vector<8x8xf32> to vector<8xf32>
    %89 = vector.shape_cast %88 : vector<8xf32> to vector<8x1xf32>
    %90 = vector.broadcast %89 : vector<8x1xf32> to vector<8x8xf32>
    %91 = arith.subf %87, %90 : vector<8x8xf32>
    %92 = math.exp %91 : vector<8x8xf32>
    %cst_42 = arith.constant dense<0.000000e+00> : vector<8xf32>
    %93 = vector.multi_reduction <add>, %92, %cst_42 [1] : vector<8x8xf32> to vector<8xf32>
    %94 = vector.shape_cast %93 : vector<8xf32> to vector<8x1xf32>
    %95 = tpu.reciprocal %94 {approx = true} : vector<8x1xf32> -> vector<8x1xf32>
    %96 = vector.broadcast %95 : vector<8x1xf32> to vector<8x8xf32>
    %97 = arith.mulf %92, %96 : vector<8x8xf32>
    %98 = arith.truncf %97 : vector<8x8xf32> to vector<8x8xbf16>
    %cst_43 = arith.constant dense<0.000000e+00> : vector<8x8xf32>
    %99 = tpu.matmul %98, %83, %cst_43 {dimension_numbers = #tpu.dot_dimension_numbers<[1], [0], [0], [1], [0, 0, 1, 1], [], []>} : vector<8x8xbf16>, vector<8x8xbf16>, vector<8x8xf32> -> vector<8x8xf32>
    %100 = arith.truncf %99 : vector<8x8xf32> to vector<8x8xbf16>
    %101 = vector.extract_strided_slice %24 {offsets = [16, 0], sizes = [8, 32], strides = [1, 1]} : vector<32x32xbf16> to vector<8x32xbf16>
    %cst_44 = arith.constant dense<0.000000e+00> : vector<8x32xf32>
    %102 = tpu.matmul %100, %101, %cst_44 {dimension_numbers = #tpu.dot_dimension_numbers<[1], [0], [0], [1], [0, 0, 1, 1], [], []>} : vector<8x8xbf16>, vector<8x32xbf16>, vector<8x32xf32> -> vector<8x32xf32>
    %103 = arith.addf %77, %102 : vector<8x32xf32>
    %104 = vector.extract_strided_slice %7 {offsets = [0, 24], sizes = [8, 8], strides = [1, 1]} : vector<8x32xf32> to vector<8x8xf32>
    %105 = arith.truncf %104 : vector<8x8xf32> to vector<8x8xbf16>
    %106 = vector.extract_strided_slice %15 {offsets = [0, 24], sizes = [8, 8], strides = [1, 1]} : vector<8x32xf32> to vector<8x8xf32>
    %107 = arith.truncf %106 : vector<8x8xf32> to vector<8x8xbf16>
    %108 = vector.extract_strided_slice %23 {offsets = [0, 24], sizes = [8, 8], strides = [1, 1]} : vector<8x32xf32> to vector<8x8xf32>
    %109 = arith.truncf %108 : vector<8x8xf32> to vector<8x8xbf16>
    %cst_45 = arith.constant dense<0.000000e+00> : vector<8x8xf32>
    %110 = tpu.matmul %105, %107, %cst_45 {dimension_numbers = #tpu.dot_dimension_numbers<[1], [1], [0], [0], [0, 0, 1, 0], [], []>} : vector<8x8xbf16>, vector<8x8xbf16>, vector<8x8xf32> -> vector<8x8xf32>
    %cst_46 = arith.constant 0.353553385 : f32
    %111 = vector.broadcast %cst_46 : f32 to vector<8x8xf32>
    %112 = arith.mulf %110, %111 : vector<8x8xf32>
    %113 = arith.addf %112, %26 : vector<8x8xf32>
    %cst_47 = arith.constant dense<0xFF800000> : vector<8xf32>
    %114 = vector.multi_reduction <maximumf>, %113, %cst_47 [1] : vector<8x8xf32> to vector<8xf32>
    %115 = vector.shape_cast %114 : vector<8xf32> to vector<8x1xf32>
    %116 = vector.broadcast %115 : vector<8x1xf32> to vector<8x8xf32>
    %117 = arith.subf %113, %116 : vector<8x8xf32>
    %118 = math.exp %117 : vector<8x8xf32>
    %cst_48 = arith.constant dense<0.000000e+00> : vector<8xf32>
    %119 = vector.multi_reduction <add>, %118, %cst_48 [1] : vector<8x8xf32> to vector<8xf32>
    %120 = vector.shape_cast %119 : vector<8xf32> to vector<8x1xf32>
    %121 = tpu.reciprocal %120 {approx = true} : vector<8x1xf32> -> vector<8x1xf32>
    %122 = vector.broadcast %121 : vector<8x1xf32> to vector<8x8xf32>
    %123 = arith.mulf %118, %122 : vector<8x8xf32>
    %124 = arith.truncf %123 : vector<8x8xf32> to vector<8x8xbf16>
    %cst_49 = arith.constant dense<0.000000e+00> : vector<8x8xf32>
    %125 = tpu.matmul %124, %109, %cst_49 {dimension_numbers = #tpu.dot_dimension_numbers<[1], [0], [0], [1], [0, 0, 1, 1], [], []>} : vector<8x8xbf16>, vector<8x8xbf16>, vector<8x8xf32> -> vector<8x8xf32>
    %126 = arith.truncf %125 : vector<8x8xf32> to vector<8x8xbf16>
    %127 = vector.extract_strided_slice %24 {offsets = [24, 0], sizes = [8, 32], strides = [1, 1]} : vector<32x32xbf16> to vector<8x32xbf16>
    %cst_50 = arith.constant dense<0.000000e+00> : vector<8x32xf32>
    %128 = tpu.matmul %126, %127, %cst_50 {dimension_numbers = #tpu.dot_dimension_numbers<[1], [0], [0], [1], [0, 0, 1, 1], [], []>} : vector<8x8xbf16>, vector<8x32xbf16>, vector<8x32xf32> -> vector<8x32xf32>
    %129 = arith.addf %103, %128 : vector<8x32xf32>
    %c0_51 = arith.constant 0 : index
    %c0_52 = arith.constant 0 : index
    %130 = vector.load %arg11[%c0_51, %c0_52] : memref<1x32xf32, #tpu.memory_space<vmem>>, vector<1x32xf32>
    %131 = vector.broadcast %130 : vector<1x32xf32> to vector<8x32xf32>
    %132 = arith.addf %129, %131 : vector<8x32xf32>
    %c0_53 = arith.constant 0 : index
    %c0_54 = arith.constant 0 : index
    %c0_55 = arith.constant 0 : index
    %133 = vector.load %arg13[%c0_53, %c0_54, %c0_55] : memref<1x8x32xf32, #tpu.memory_space<vmem>>, vector<1x8x32xf32>
    %134 = vector.shape_cast %133 : vector<1x8x32xf32> to vector<8x32xf32>
    %135 = vector.shape_cast %132 : vector<8x32xf32> to vector<1x8x32xf32>
    tpu.vector_store %arg13[%c0_53, %c0_54, %c0_55], %135 {strides = array<i32>} : memref<1x8x32xf32, #tpu.memory_space<vmem>>, vector<1x8x32xf32>,
    return
  }
  func.func @transform_0(%arg0: i32) -> (i32, i32, i32) {
    %c0_i32 = arith.constant 0 : i32
    %c0_i32_0 = arith.constant 0 : i32
    %c0_i32_1 = arith.constant 0 : i32
    return %arg0, %c0_i32, %c0_i32_0 : i32, i32, i32
  }
  func.func @transform_1(%arg0: i32) -> (i32, i32, i32) {
    %c0_i32 = arith.constant 0 : i32
    %c0_i32_0 = arith.constant 0 : i32
    %c0_i32_1 = arith.constant 0 : i32
    return %arg0, %c0_i32, %c0_i32_0 : i32, i32, i32
  }
  func.func @transform_2(%arg0: i32) -> (i32, i32, i32) {
    %c0_i32 = arith.constant 0 : i32
    %c0_i32_0 = arith.constant 0 : i32
    %c0_i32_1 = arith.constant 0 : i32
    return %arg0, %c0_i32, %c0_i32_0 : i32, i32, i32
  }
  func.func @transform_3(%arg0: i32) -> (i32, i32) {
    %c0_i32 = arith.constant 0 : i32
    %c0_i32_0 = arith.constant 0 : i32
    %c0_i32_1 = arith.constant 0 : i32
    return %c0_i32, %c0_i32_0 : i32, i32
  }
  func.func @transform_4(%arg0: i32) -> (i32, i32) {
    %c0_i32 = arith.constant 0 : i32
    %c0_i32_0 = arith.constant 0 : i32
    %c0_i32_1 = arith.constant 0 : i32
    return %c0_i32, %c0_i32_0 : i32, i32
  }
  func.func @transform_5(%arg0: i32) -> (i32, i32) {
    %c0_i32 = arith.constant 0 : i32
    %c0_i32_0 = arith.constant 0 : i32
    %c0_i32_1 = arith.constant 0 : i32
    return %c0_i32, %c0_i32_0 : i32, i32
  }
  func.func @transform_6(%arg0: i32) -> (i32, i32) {
    %c0_i32 = arith.constant 0 : i32
    %c0_i32_0 = arith.constant 0 : i32
    %c0_i32_1 = arith.constant 0 : i32
    return %c0_i32, %c0_i32_0 : i32, i32
  }
  func.func @transform_7(%arg0: i32) -> (i32, i32) {
    %c0_i32 = arith.constant 0 : i32
    %c0_i32_0 = arith.constant 0 : i32
    %c0_i32_1 = arith.constant 0 : i32
    return %c0_i32, %c0_i32_0 : i32, i32
  }
  func.func @transform_8(%arg0: i32) -> (i32, i32) {
    %c0_i32 = arith.constant 0 : i32
    %c0_i32_0 = arith.constant 0 : i32
    %c0_i32_1 = arith.constant 0 : i32
    return %c0_i32, %c0_i32_0 : i32, i32
  }
  func.func @transform_9(%arg0: i32) -> (i32, i32) {
    %c0_i32 = arith.constant 0 : i32
    %c0_i32_0 = arith.constant 0 : i32
    %c0_i32_1 = arith.constant 0 : i32
    return %c0_i32, %c0_i32_0 : i32, i32
  }
  func.func @transform_10(%arg0: i32) -> (i32, i32) {
    %c0_i32 = arith.constant 0 : i32
    %c0_i32_0 = arith.constant 0 : i32
    %c0_i32_1 = arith.constant 0 : i32
    return %c0_i32, %c0_i32_0 : i32, i32
  }
  func.func @transform_11(%arg0: i32) -> (i32, i32, i32) {
    %c0_i32 = arith.constant 0 : i32
    %c0_i32_0 = arith.constant 0 : i32
    %c0_i32_1 = arith.constant 0 : i32
    return %arg0, %c0_i32, %c0_i32_0 : i32, i32, i32
  }
  func.func @transform_12(%arg0: i32) -> (i32, i32, i32) {
    %c0_i32 = arith.constant 0 : i32
    %c0_i32_0 = arith.constant 0 : i32
    %c0_i32_1 = arith.constant 0 : i32
    return %arg0, %c0_i32, %c0_i32_0 : i32, i32, i32
  }
}

</mosaic_0001>

<llo_original>
// kernel: tpu_custom_call.1
$region0: #{tpu_custom_call.1}
  #allocation0 [shape = 'u32[]', space=smem, size = 0x4, offset = 0x4, fixed_abs, tag = 'smem constant byte address 0x4 - core index']
  #allocation1 [shape = 'u32[72,128]{1,0:T(1,128)}', space=vmem, size = 0x9000, scoped, tag = 'internal scratch']
  %s0 = inlined_call_operand.hbm [shape: f32[2,8,32], index: 0, kind: input, shape index: {}]
  %s1 = inlined_call_operand.hbm [shape: f32[2,8,32], index: 1, kind: input, shape index: {}]
  %s2 = inlined_call_operand.hbm [shape: f32[2,8,32], index: 2, kind: input, shape index: {}]
  %s3 = inlined_call_operand.hbm [shape: bf16[32,32], index: 3, kind: input, shape index: {}]
  %s4 = inlined_call_operand.vmem [shape: f32[1,32], index: 4, kind: input, shape index: {}]
  %s5 = inlined_call_operand.hbm [shape: bf16[32,32], index: 5, kind: input, shape index: {}]
  %s6 = inlined_call_operand.vmem [shape: f32[1,32], index: 6, kind: input, shape index: {}]
  %s7 = inlined_call_operand.hbm [shape: bf16[32,32], index: 7, kind: input, shape index: {}]
  %s8 = inlined_call_operand.vmem [shape: f32[1,32], index: 8, kind: input, shape index: {}]
  %s9 = inlined_call_operand.hbm [shape: bf16[32,32], index: 9, kind: input, shape index: {}]
  %s10 = inlined_call_operand.vmem [shape: f32[1,32], index: 10, kind: input, shape index: {}]
  %s11 = inlined_call_operand.hbm [shape: f32[2,8,8], index: 11, kind: input, shape index: {}]
  %s12 = inlined_call_operand.hbm [shape: f32[2,8,32], index: 12, kind: output, shape index: {}]
  %s13 = sld [smem:[#allocation0]]
  $region113: #{tpu_custom_call.1} parent=0
    _
  %s15 = ssub.s32 1, %s13
  %s16 = scalar_select 0, %s15, %s13
  $region1: #{tpu_custom_call.1} parent=0
    #allocation2 [shape = 'u8[8192]{0}', space=vmem, size = 0x2000, scoped, tag = 'input window, operand 0']
    #allocation3 [shape = 's32[2]{0}', space=sflag, size = 0x8, scoped, tag = 'scoped memory for tpu_custom_call.1']
    #allocation4 [shape = 's32[2]{0}', space=sflag, size = 0x8, scoped, tag = 'scoped memory for tpu_custom_call.1']
    #allocation5 [shape = 'u8[8192]{0}', space=vmem, size = 0x2000, scoped, tag = 'input window, operand 1']
    #allocation6 [shape = 's32[2]{0}', space=sflag, size = 0x8, scoped, tag = 'scoped memory for tpu_custom_call.1']
    #allocation7 [shape = 'u8[8192]{0}', space=vmem, size = 0x2000, scoped, tag = 'input window, operand 2']
    #allocation8 [shape = 'u8[8192]{0}', space=vmem, size = 0x2000, scoped, tag = 'input window, operand 3, single buffered']
    #allocation9 [shape = 's32[1]{0}', space=sflag, size = 0x4, scoped, tag = 'scoped memory for tpu_custom_call.1']
    #allocation10 [shape = 'u8[8192]{0}', space=vmem, size = 0x2000, scoped, tag = 'input window, operand 5, single buffered']
    #allocation11 [shape = 'u8[8192]{0}', space=vmem, size = 0x2000, scoped, tag = 'input window, operand 7, single buffered']
    #allocation12 [shape = 's32[1]{0}', space=sflag, size = 0x4, scoped, tag = 'scoped memory for tpu_custom_call.1']
    #allocation13 [shape = 'u8[8192]{0}', space=vmem, size = 0x2000, scoped, tag = 'input window, operand 9, single buffered']
    #allocation14 [shape = 'u8[8192]{0}', space=vmem, size = 0x2000, scoped, tag = 'input window, operand 11']
    #allocation15 [shape = 's32[2]{0}', space=sflag, size = 0x8, scoped, tag = 'scoped memory for tpu_custom_call.1']
    #allocation16 [shape = 'u8[8192]{0}', space=vmem, size = 0x2000, scoped, tag = 'output window, operand 0']
    %17 = vsyncpa [#allocation3], 0
    %s18 = scalar_lea.sflag [#allocation3], 1
    %19 = vsyncpa %s18, 0
    %20 = vsyncpa [#allocation6], 0
    %s21 = scalar_lea.sflag [#allocation6], 1
    %22 = vsyncpa %s21, 0
    %23 = vsyncpa [#allocation9], 0
    %24 = vsyncpa [#allocation12], 0
    %25 = vsyncpa [#allocation15], 0
    %s26 = scalar_lea.sflag [#allocation15], 1
    %27 = vsyncpa %s26, 0
    %28 = vsyncpa [#allocation4], 0
    %s29 = scalar_lea.sflag [#allocation4], 1
    %30 = vsyncpa %s29, 0
    loop: start=0, step=1, limit=4
    $region2: #{tpu_custom_call.1} parent=1 // loop_pre_header
      _
    $region3: #{tpu_custom_call.1} parent=1 // loop_header
      %s32 = sphi 0, %s36
      %p33 = scmp.ge.s32.totalorder %s32, 4
      %s42 = sphi 0, %s44
      %s45 = sphi 0, %s42
      %s46 = sphi 0, %s45
      %s62 = sphi 0, %s46
      %s68 = sphi 0, %s70
      %s71 = sphi 0, %s68
      %s72 = sphi 0, %s71
      %s88 = sphi 0, %s72
      %s94 = sphi 0, %s96
      %s97 = sphi 0, %s94
      %s98 = sphi 0, %s97
      %s114 = sphi 0, %s98
      %s118 = sphi 0, %s118
      %s120 = sphi 0, %s118
      %s121 = sphi 0, %s120
      %s135 = sphi 0, %s121
      %s139 = sphi 0, %s139
      %s141 = sphi 0, %s139
      %s142 = sphi 0, %s141
      %s156 = sphi 0, %s142
      %s160 = sphi 0, %s160
      %s162 = sphi 0, %s160
      %s163 = sphi 0, %s162
      %s177 = sphi 0, %s163
      %s181 = sphi 0, %s181
      %s183 = sphi 0, %s181
      %s184 = sphi 0, %s183
      %s198 = sphi 0, %s184
      %s202 = sphi 0, %s202
      %s204 = sphi 0, %s202
      %s205 = sphi 0, %s204
      %s219 = sphi 0, %s205
      %s223 = sphi 0, %s223
      %s225 = sphi 0, %s223
      %s226 = sphi 0, %s225
      %s240 = sphi 0, %s226
      %s244 = sphi 0, %s244
      %s246 = sphi 0, %s244
      %s247 = sphi 0, %s246
      %s261 = sphi 0, %s247
      %s265 = sphi 0, %s265
      %s267 = sphi 0, %s265
      %s268 = sphi 0, %s267
      %s282 = sphi 0, %s268
      %s288 = sphi 0, %s290
      %s291 = sphi 0, %s288
      %s292 = sphi 0, %s291
      %s308 = sphi 0, %s292
      %s314 = sphi 0, %s316
      %s317 = sphi 0, %s314
      %s318 = sphi 0, %s317
      %s334 = sphi 0, %s318
    $region4: #{tpu_custom_call.1} parent=1 // loop_header_branch
      %35 = sbr.rel (%p33) target = $region8
    $region5: #{tpu_custom_call.1} parent=1 // loop_body
      %s37 = ssub.s32 %s32, 1
      %s38 = ssub.s32 %s32, 2
      %s39 = sadd.s32 %s32, 1
      %s40 = ssub.s32 %s32, %s39
      %p41 = scmp.eq.s32.totalorder %s40, 0
      %s43 = sadd.s32 %s42, 1
      %s44 = scalar_select %p41, %s42, %s43
      %p47 = pneg %p41
      %p48 = scmp.eq.s32.totalorder %s32, 1
      %p49 = por %p47, %p48
      %p50 = scmp.ne.s32.totalorder %s42, %s45
      %p51 = scmp.eq.s32.totalorder %s32, 0
      %p52 = por %p50, %p51
      %p53 = scmp.ne.s32.totalorder %s42, %s45
      %p54 = scmp.eq.s32.totalorder %s37, 1
      %p55 = por %p53, %p54
      %p56 = scmp.ne.s32.totalorder %s45, %s46
      %p57 = scmp.eq.s32.totalorder %s37, 0
      %p58 = por %p56, %p57
      %p59 = scmp.ne.s32.totalorder %s45, %s46
      %p60 = scmp.eq.s32.totalorder %s38, 1
      %p61 = por %p59, %p60
      %p63 = scmp.ne.s32.totalorder %s46, %s62
      %p64 = scmp.eq.s32.totalorder %s38, 0
      %p65 = por %p63, %p64
      %s66 = ssub.s32 %s32, %s39
      %p67 = scmp.eq.s32.totalorder %s66, 0
      %s69 = sadd.s32 %s68, 1
      %s70 = scalar_select %p67, %s68, %s69
      %p73 = pneg %p67
      %p74 = scmp.eq.s32.totalorder %s32, 1
      %p75 = por %p73, %p74
      %p76 = scmp.ne.s32.totalorder %s68, %s71
      %p77 = scmp.eq.s32.totalorder %s32, 0
      %p78 = por %p76, %p77
      %p79 = scmp.ne.s32.totalorder %s68, %s71
      %p80 = scmp.eq.s32.totalorder %s37, 1
      %p81 = por %p79, %p80
      %p82 = scmp.ne.s32.totalorder %s71, %s72
      %p83 = scmp.eq.s32.totalorder %s37, 0
      %p84 = por %p82, %p83
      %p85 = scmp.ne.s32.totalorder %s71, %s72
      %p86 = scmp.eq.s32.totalorder %s38, 1
      %p87 = por %p85, %p86
      %p89 = scmp.ne.s32.totalorder %s72, %s88
      %p90 = scmp.eq.s32.totalorder %s38, 0
      %p91 = por %p89, %p90
      %s92 = ssub.s32 %s32, %s39
      %p93 = scmp.eq.s32.totalorder %s92, 0
      %s95 = sadd.s32 %s94, 1
      %s96 = scalar_select %p93, %s94, %s95
      %p99 = pneg %p93
      %p100 = scmp.eq.s32.totalorder %s32, 1
      %p101 = por %p99, %p100
      %p102 = scmp.ne.s32.totalorder %s94, %s97
      %p103 = scmp.eq.s32.totalorder %s32, 0
      %p104 = por %p102, %p103
      %p105 = scmp.ne.s32.totalorder %s94, %s97
      %p106 = scmp.eq.s32.totalorder %s37, 1
      %p107 = por %p105, %p106
      %p108 = scmp.ne.s32.totalorder %s97, %s98
      %p109 = scmp.eq.s32.totalorder %s37, 0
      %p110 = por %p108, %p109
      %p111 = scmp.ne.s32.totalorder %s97, %s98
      %p112 = scmp.eq.s32.totalorder %s38, 1
      %p113 = por %p111, %p112
      %p115 = scmp.ne.s32.totalorder %s98, %s114
      %p116 = scmp.eq.s32.totalorder %s38, 0
      %p117 = por %p115, %p116
      %s119 = sadd.s32 %s118, 1
      %p122 = scmp.eq.s32.totalorder %s32, 1
      %p123 = scmp.ne.s32.totalorder %s118, %s120
      %p124 = scmp.eq.s32.totalorder %s32, 0
      %p125 = por %p123, %p124
      %p126 = scmp.ne.s32.totalorder %s118, %s120
      %p127 = scmp.eq.s32.totalorder %s37, 1
      %p128 = por %p126, %p127
      %p129 = scmp.ne.s32.totalorder %s120, %s121
      %p130 = scmp.eq.s32.totalorder %s37, 0
      %p131 = por %p129, %p130
      %p132 = scmp.ne.s32.totalorder %s120, %s121
      %p133 = scmp.eq.s32.totalorder %s38, 1
      %p134 = por %p132, %p133
      %p136 = scmp.ne.s32.totalorder %s121, %s135
      %p137 = scmp.eq.s32.totalorder %s38, 0
      %p138 = por %p136, %p137
      %s140 = sadd.s32 %s139, 1
      %p143 = scmp.eq.s32.totalorder %s32, 1
      %p144 = scmp.ne.s32.totalorder %s139, %s141
      %p145 = scmp.eq.s32.totalorder %s32, 0
      %p146 = por %p144, %p145
      %p147 = scmp.ne.s32.totalorder %s139, %s141
      %p148 = scmp.eq.s32.totalorder %s37, 1
      %p149 = por %p147, %p148
      %p150 = scmp.ne.s32.totalorder %s141, %s142
      %p151 = scmp.eq.s32.totalorder %s37, 0
      %p152 = por %p150, %p151
      %p153 = scmp.ne.s32.totalorder %s141, %s142
      %p154 = scmp.eq.s32.totalorder %s38, 1
      %p155 = por %p153, %p154
      %p157 = scmp.ne.s32.totalorder %s142, %s156
      %p158 = scmp.eq.s32.totalorder %s38, 0
      %p159 = por %p157, %p158
      %s161 = sadd.s32 %s160, 1
      %p164 = scmp.eq.s32.totalorder %s32, 1
      %p165 = scmp.ne.s32.totalorder %s160, %s162
      %p166 = scmp.eq.s32.totalorder %s32, 0
      %p167 = por %p165, %p166
      %p168 = scmp.ne.s32.totalorder %s160, %s162
      %p169 = scmp.eq.s32.totalorder %s37, 1
      %p170 = por %p168, %p169
      %p171 = scmp.ne.s32.totalorder %s162, %s163
      %p172 = scmp.eq.s32.totalorder %s37, 0
      %p173 = por %p171, %p172
      %p174 = scmp.ne.s32.totalorder %s162, %s163
      %p175 = scmp.eq.s32.totalorder %s38, 1
      %p176 = por %p174, %p175
      %p178 = scmp.ne.s32.totalorder %s163, %s177
      %p179 = scmp.eq.s32.totalorder %s38, 0
      %p180 = por %p178, %p179
      %s182 = sadd.s32 %s181, 1
      %p185 = scmp.eq.s32.totalorder %s32, 1
      %p186 = scmp.ne.s32.totalorder %s181, %s183
      %p187 = scmp.eq.s32.totalorder %s32, 0
      %p188 = por %p186, %p187
      %p189 = scmp.ne.s32.totalorder %s181, %s183
      %p190 = scmp.eq.s32.totalorder %s37, 1
      %p191 = por %p189, %p190
      %p192 = scmp.ne.s32.totalorder %s183, %s184
      %p193 = scmp.eq.s32.totalorder %s37, 0
      %p194 = por %p192, %p193
      %p195 = scmp.ne.s32.totalorder %s183, %s184
      %p196 = scmp.eq.s32.totalorder %s38, 1
      %p197 = por %p195, %p196
      %p199 = scmp.ne.s32.totalorder %s184, %s198
      %p200 = scmp.eq.s32.totalorder %s38, 0
      %p201 = por %p199, %p200
      %s203 = sadd.s32 %s202, 1
      %p206 = scmp.eq.s32.totalorder %s32, 1
      %p207 = scmp.ne.s32.totalorder %s202, %s204
      %p208 = scmp.eq.s32.totalorder %s32, 0
      %p209 = por %p207, %p208
      %p210 = scmp.ne.s32.totalorder %s202, %s204
      %p211 = scmp.eq.s32.totalorder %s37, 1
      %p212 = por %p210, %p211
      %p213 = scmp.ne.s32.totalorder %s204, %s205
      %p214 = scmp.eq.s32.totalorder %s37, 0
      %p215 = por %p213, %p214
      %p216 = scmp.ne.s32.totalorder %s204, %s205
      %p217 = scmp.eq.s32.totalorder %s38, 1
      %p218 = por %p216, %p217
      %p220 = scmp.ne.s32.totalorder %s205, %s219
      %p221 = scmp.eq.s32.totalorder %s38, 0
      %p222 = por %p220, %p221
      %s224 = sadd.s32 %s223, 1
      %p227 = scmp.eq.s32.totalorder %s32, 1
      %p228 = scmp.ne.s32.totalorder %s223, %s225
      %p229 = scmp.eq.s32.totalorder %s32, 0
      %p230 = por %p228, %p229
      %p231 = scmp.ne.s32.totalorder %s223, %s225
      %p232 = scmp.eq.s32.totalorder %s37, 1
      %p233 = por %p231, %p232
      %p234 = scmp.ne.s32.totalorder %s225, %s226
      %p235 = scmp.eq.s32.totalorder %s37, 0
      %p236 = por %p234, %p235
      %p237 = scmp.ne.s32.totalorder %s225, %s226
      %p238 = scmp.eq.s32.totalorder %s38, 1
      %p239 = por %p237, %p238
      %p241 = scmp.ne.s32.totalorder %s226, %s240
      %p242 = scmp.eq.s32.totalorder %s38, 0
      %p243 = por %p241, %p242
      %s245 = sadd.s32 %s244, 1
      %p248 = scmp.eq.s32.totalorder %s32, 1
      %p249 = scmp.ne.s32.totalorder %s244, %s246
      %p250 = scmp.eq.s32.totalorder %s32, 0
      %p251 = por %p249, %p250
      %p252 = scmp.ne.s32.totalorder %s244, %s246
      %p253 = scmp.eq.s32.totalorder %s37, 1
      %p254 = por %p252, %p253
      %p255 = scmp.ne.s32.totalorder %s246, %s247
      %p256 = scmp.eq.s32.totalorder %s37, 0
      %p257 = por %p255, %p256
      %p258 = scmp.ne.s32.totalorder %s246, %s247
      %p259 = scmp.eq.s32.totalorder %s38, 1
      %p260 = por %p258, %p259
      %p262 = scmp.ne.s32.totalorder %s247, %s261
      %p263 = scmp.eq.s32.totalorder %s38, 0
      %p264 = por %p262, %p263
      %s266 = sadd.s32 %s265, 1
      %p269 = scmp.eq.s32.totalorder %s32, 1
      %p270 = scmp.ne.s32.totalorder %s265, %s267
      %p271 = scmp.eq.s32.totalorder %s32, 0
      %p272 = por %p270, %p271
      %p273 = scmp.ne.s32.totalorder %s265, %s267
      %p274 = scmp.eq.s32.totalorder %s37, 1
      %p275 = por %p273, %p274
      %p276 = scmp.ne.s32.totalorder %s267, %s268
      %p277 = scmp.eq.s32.totalorder %s37, 0
      %p278 = por %p276, %p277
      %p279 = scmp.ne.s32.totalorder %s267, %s268
      %p280 = scmp.eq.s32.totalorder %s38, 1
      %p281 = por %p279, %p280
      %p283 = scmp.ne.s32.totalorder %s268, %s282
      %p284 = scmp.eq.s32.totalorder %s38, 0
      %p285 = por %p283, %p284
      %s286 = ssub.s32 %s32, %s39
      %p287 = scmp.eq.s32.totalorder %s286, 0
      %s289 = sadd.s32 %s288, 1
      %s290 = scalar_select %p287, %s288, %s289
      %p293 = pneg %p287
      %p294 = scmp.eq.s32.totalorder %s32, 1
      %p295 = por %p293, %p294
      %p296 = scmp.ne.s32.totalorder %s288, %s291
      %p297 = scmp.eq.s32.totalorder %s32, 0
      %p298 = por %p296, %p297
      %p299 = scmp.ne.s32.totalorder %s288, %s291
      %p300 = scmp.eq.s32.totalorder %s37, 1
      %p301 = por %p299, %p300
      %p302 = scmp.ne.s32.totalorder %s291, %s292
      %p303 = scmp.eq.s32.totalorder %s37, 0
      %p304 = por %p302, %p303
      %p305 = scmp.ne.s32.totalorder %s291, %s292
      %p306 = scmp.eq.s32.totalorder %s38, 1
      %p307 = por %p305, %p306
      %p309 = scmp.ne.s32.totalorder %s292, %s308
      %p310 = scmp.eq.s32.totalorder %s38, 0
      %p311 = por %p309, %p310
      %s312 = ssub.s32 %s32, %s39
      %p313 = scmp.eq.s32.totalorder %s312, 0
      %s315 = sadd.s32 %s314, 1
      %s316 = scalar_select %p313, %s314, %s315
      %p319 = pneg %p313
      %p320 = scmp.eq.s32.totalorder %s32, 1
      %p321 = por %p319, %p320
      %p322 = scmp.ne.s32.totalorder %s314, %s317
      %p323 = scmp.eq.s32.totalorder %s32, 0
      %p324 = por %p322, %p323
      %p325 = scmp.ne.s32.totalorder %s314, %s317
      %p326 = scmp.eq.s32.totalorder %s37, 1
      %p327 = por %p325, %p326
      %p328 = scmp.ne.s32.totalorder %s317, %s318
      %p329 = scmp.eq.s32.totalorder %s37, 0
      %p330 = por %p328, %p329
      %p331 = scmp.ne.s32.totalorder %s317, %s318
      %p332 = scmp.eq.s32.totalorder %s38, 1
      %p333 = por %p331, %p332
      %p335 = scmp.ne.s32.totalorder %s318, %s334
      %p336 = scmp.eq.s32.totalorder %s38, 0
      %p337 = por %p335, %p336
      %p338 = scmp.le.s32.totalorder 1, %s32
      %p339 = scmp.lt.s32.totalorder %s32, 3
      %p340 = pnand %p338, %p339
      %p341 = pneg %p340
      // Predicated region
      $region9: #{tpu_custom_call.1} parent=5 // pred_check
        _
      $region10: #{tpu_custom_call.1} parent=5 // pred_check_branch
        %343 = sbr.rel (%p340) target = $region12
      $region11: #{tpu_custom_call.1} parent=5 // pred_region
        %s344 = ssub.s32 %s32, 1
        // Predicated region
        $region13: #{tpu_custom_call.1} parent=11 // pred_check
          %p345 = pneg %p131
        $region14: #{tpu_custom_call.1} parent=11 // pred_check_branch
          %347 = sbr.rel (%p345) target = $region16
        $region15: #{tpu_custom_call.1} parent=11 // pred_region
          %349 = vsyncadd [#allocation9], 0
          %s350 = sshll.u32 %s3, 4
          %s351 = int_to_ptr.hbm [resolvable:$true] %s350
          %s352 = sshll.u32 [#allocation8], 4
          %s353 = int_to_ptr.vmem [resolvable:$true] %s352
          %358 = dma.hbm_to_vmem [thread:$0]  %s351, 256, %s353, [#allocation9], 64, 64, 4
        $region16: #{tpu_custom_call.1} parent=11 // pred_fallthru
          _
        // Predicated region
        $region17: #{tpu_custom_call.1} parent=11 // pred_check
          %p359 = pneg %p152
        $region18: #{tpu_custom_call.1} parent=11 // pred_check_branch
          %361 = sbr.rel (%p359) target = $region20
        $region19: #{tpu_custom_call.1} parent=11 // pred_region
          _
        $region20: #{tpu_custom_call.1} parent=11 // pred_fallthru
          _
        // Predicated region
        $region21: #{tpu_custom_call.1} parent=11 // pred_check
          %p362 = pneg %p173
        $region22: #{tpu_custom_call.1} parent=11 // pred_check_branch
          %364 = sbr.rel (%p362) target = $region24
        $region23: #{tpu_custom_call.1} parent=11 // pred_region
          %366 = vsyncadd [#allocation9], 0
          %s367 = sshll.u32 %s5, 4
          %s368 = int_to_ptr.hbm [resolvable:$true] %s367
          %s369 = sshll.u32 [#allocation10], 4
          %s370 = int_to_ptr.vmem [resolvable:$true] %s369
          %375 = dma.hbm_to_vmem [thread:$0]  %s368, 256, %s370, [#allocation9], 64, 64, 4
        $region24: #{tpu_custom_call.1} parent=11 // pred_fallthru
          _
        // Predicated region
        $region25: #{tpu_custom_call.1} parent=11 // pred_check
          %p376 = pneg %p194
        $region26: #{tpu_custom_call.1} parent=11 // pred_check_branch
          %378 = sbr.rel (%p376) target = $region28
        $region27: #{tpu_custom_call.1} parent=11 // pred_region
          _
        $region28: #{tpu_custom_call.1} parent=11 // pred_fallthru
          _
        // Predicated region
        $region29: #{tpu_custom_call.1} parent=11 // pred_check
          %p379 = pneg %p215
        $region30: #{tpu_custom_call.1} parent=11 // pred_check_branch
          %381 = sbr.rel (%p379) target = $region32
        $region31: #{tpu_custom_call.1} parent=11 // pred_region
          %383 = vsyncadd [#allocation12], 0
          %s384 = sshll.u32 %s7, 4
          %s385 = int_to_ptr.hbm [resolvable:$true] %s384
          %s386 = sshll.u32 [#allocation11], 4
          %s387 = int_to_ptr.vmem [resolvable:$true] %s386
          %392 = dma.hbm_to_vmem [thread:$0]  %s385, 256, %s387, [#allocation12], 64, 64, 4
        $region32: #{tpu_custom_call.1} parent=11 // pred_fallthru
          _
        // Predicated region
        $region33: #{tpu_custom_call.1} parent=11 // pred_check
          %p393 = pneg %p236
        $region34: #{tpu_custom_call.1} parent=11 // pred_check_branch
          %395 = sbr.rel (%p393) target = $region36
        $region35: #{tpu_custom_call.1} parent=11 // pred_region
          _
        $region36: #{tpu_custom_call.1} parent=11 // pred_fallthru
          _
        // Predicated region
        $region37: #{tpu_custom_call.1} parent=11 // pred_check
          %p396 = pneg %p257
        $region38: #{tpu_custom_call.1} parent=11 // pred_check_branch
          %398 = sbr.rel (%p396) target = $region40
        $region39: #{tpu_custom_call.1} parent=11 // pred_region
          %400 = vsyncadd [#allocation12], 0
          %s401 = sshll.u32 %s9, 4
          %s402 = int_to_ptr.hbm [resolvable:$true] %s401
          %s403 = sshll.u32 [#allocation13], 4
          %s404 = int_to_ptr.vmem [resolvable:$true] %s403
          %409 = dma.hbm_to_vmem [thread:$0]  %s402, 256, %s404, [#allocation12], 64, 64, 4
        $region40: #{tpu_custom_call.1} parent=11 // pred_fallthru
          _
        // Predicated region
        $region41: #{tpu_custom_call.1} parent=11 // pred_check
          %p410 = pneg %p278
        $region42: #{tpu_custom_call.1} parent=11 // pred_check_branch
          %412 = sbr.rel (%p410) target = $region44
        $region43: #{tpu_custom_call.1} parent=11 // pred_region
          _
        $region44: #{tpu_custom_call.1} parent=11 // pred_fallthru
          _
      $region12: #{tpu_custom_call.1} parent=5 // pred_fallthru
        _
      %p413 = scmp.lt.s32.totalorder %s32, 2
      // Predicated region
      $region45: #{tpu_custom_call.1} parent=5 // pred_check
        %p414 = pneg %p413
      $region46: #{tpu_custom_call.1} parent=5 // pred_check_branch
        %416 = sbr.rel (%p414) target = $region48
      $region47: #{tpu_custom_call.1} parent=5 // pred_region
        // Predicated region
        $region49: #{tpu_custom_call.1} parent=47 // pred_check
          %p417 = pneg %p52
        $region50: #{tpu_custom_call.1} parent=47 // pred_check_branch
          %419 = sbr.rel (%p417) target = $region52
        $region51: #{tpu_custom_call.1} parent=47 // pred_region
          %s420 = sand.u32 %s42, 1
          %s421 = scalar_lea.sflag [#allocation3], %s420
          %s422 = sand.u32 %s42, 1
          %s423 = smul.addr %s422, 8
          %s424 = scalar_lea.vmem [#allocation2], %s423
          %426 = vsyncadd %s421, 0
          %s427 = smul.addr %s32, 8
          %s428 = scalar_lea.hbm %s0, %s427
          %s430 = sshll.u32 %s428, 4
          %s431 = int_to_ptr.hbm [resolvable:$true] %s430
          %s432 = sshll.u32 %s424, 4
          %s433 = int_to_ptr.vmem [resolvable:$true] %s432
          %435 = dma.hbm_to_vmem [thread:$0]  %s431, 128, %s433, %s421
        $region52: #{tpu_custom_call.1} parent=47 // pred_fallthru
          _
        // Predicated region
        $region53: #{tpu_custom_call.1} parent=47 // pred_check
          %p436 = pneg %p78
        $region54: #{tpu_custom_call.1} parent=47 // pred_check_branch
          %438 = sbr.rel (%p436) target = $region56
        $region55: #{tpu_custom_call.1} parent=47 // pred_region
          %s439 = sand.u32 %s32, 1
          %s440 = scalar_lea.sflag [#allocation6], %s439
          %s441 = sand.u32 %s68, 1
          %s442 = smul.addr %s441, 8
          %s443 = scalar_lea.vmem [#allocation5], %s442
          %445 = vsyncadd %s440, 0
          %s446 = smul.addr %s32, 8
          %s447 = scalar_lea.hbm %s1, %s446
          %s449 = sshll.u32 %s447, 4
          %s450 = int_to_ptr.hbm [resolvable:$true] %s449
          %s451 = sshll.u32 %s443, 4
          %s452 = int_to_ptr.vmem [resolvable:$true] %s451
          %454 = dma.hbm_to_vmem [thread:$0]  %s450, 128, %s452, %s440
        $region56: #{tpu_custom_call.1} parent=47 // pred_fallthru
          _
        // Predicated region
        $region57: #{tpu_custom_call.1} parent=47 // pred_check
          %p455 = pneg %p104
        $region58: #{tpu_custom_call.1} parent=47 // pred_check_branch
          %457 = sbr.rel (%p455) target = $region60
        $region59: #{tpu_custom_call.1} parent=47 // pred_region
          %s458 = sand.u32 %s32, 1
          %s459 = scalar_lea.sflag [#allocation6], %s458
          %s460 = sand.u32 %s94, 1
          %s461 = smul.addr %s460, 8
          %s462 = scalar_lea.vmem [#allocation7], %s461
          %464 = vsyncadd %s459, 0
          %s465 = smul.addr %s32, 8
          %s466 = scalar_lea.hbm %s2, %s465
          %s468 = sshll.u32 %s466, 4
          %s469 = int_to_ptr.hbm [resolvable:$true] %s468
          %s470 = sshll.u32 %s462, 4
          %s471 = int_to_ptr.vmem [resolvable:$true] %s470
          %473 = dma.hbm_to_vmem [thread:$0]  %s469, 128, %s471, %s459
        $region60: #{tpu_custom_call.1} parent=47 // pred_fallthru
          _
        // Predicated region
        $region61: #{tpu_custom_call.1} parent=47 // pred_check
          %p474 = pneg %p298
        $region62: #{tpu_custom_call.1} parent=47 // pred_check_branch
          %476 = sbr.rel (%p474) target = $region64
        $region63: #{tpu_custom_call.1} parent=47 // pred_region
          %s477 = sand.u32 %s288, 1
          %s478 = scalar_lea.sflag [#allocation15], %s477
          %s479 = sand.u32 %s288, 1
          %s480 = smul.addr %s479, 8
          %s481 = scalar_lea.vmem [#allocation14], %s480
          %483 = vsyncadd %s478, 0
          %s484 = smul.addr %s32, 8
          %s485 = scalar_lea.hbm %s11, %s484
          %s487 = sshll.u32 %s485, 4
          %s488 = int_to_ptr.hbm [resolvable:$true] %s487
          %s489 = sshll.u32 %s481, 4
          %s490 = int_to_ptr.vmem [resolvable:$true] %s489
          %492 = dma.hbm_to_vmem [thread:$0]  %s488, 128, %s490, %s478
        $region64: #{tpu_custom_call.1} parent=47 // pred_fallthru
          _
      $region48: #{tpu_custom_call.1} parent=5 // pred_fallthru
        _
      %p493 = scmp.le.s32.totalorder 1, %s32
      %p494 = scmp.lt.s32.totalorder %s32, 3
      %p495 = pnand %p493, %p494
      %p496 = pneg %p495
      // Predicated region
      $region65: #{tpu_custom_call.1} parent=5 // pred_check
        _
      $region66: #{tpu_custom_call.1} parent=5 // pred_check_branch
        %498 = sbr.rel (%p495) target = $region68
      $region67: #{tpu_custom_call.1} parent=5 // pred_region
        %s499 = ssub.s32 %s32, 1
        %s500 = sand.u32 %s45, 1
        %s501 = scalar_lea.sflag [#allocation3], %s500
        %s502 = sand.u32 %s45, 1
        %s503 = smul.addr %s502, 8
        %s504 = scalar_lea.vmem [#allocation2], %s503
        // Predicated region
        $region69: #{tpu_custom_call.1} parent=67 // pred_check
          %p505 = pneg %p58
        $region70: #{tpu_custom_call.1} parent=67 // pred_check_branch
          %507 = sbr.rel (%p505) target = $region72
        $region71: #{tpu_custom_call.1} parent=67 // pred_region
          %509 = dma.done %s501, 128
        $region72: #{tpu_custom_call.1} parent=67 // pred_fallthru
          _
        %s510 = sand.u32 %s37, 1
        %s511 = scalar_lea.sflag [#allocation6], %s510
        %s512 = sand.u32 %s71, 1
        %s513 = smul.addr %s512, 8
        %s514 = scalar_lea.vmem [#allocation5], %s513
        // Predicated region
        $region73: #{tpu_custom_call.1} parent=67 // pred_check
          %p515 = pneg %p84
        $region74: #{tpu_custom_call.1} parent=67 // pred_check_branch
          %517 = sbr.rel (%p515) target = $region76
        $region75: #{tpu_custom_call.1} parent=67 // pred_region
          %519 = dma.done %s511, 128
        $region76: #{tpu_custom_call.1} parent=67 // pred_fallthru
          _
        %s520 = sand.u32 %s37, 1
        %s521 = scalar_lea.sflag [#allocation6], %s520
        %s522 = sand.u32 %s97, 1
        %s523 = smul.addr %s522, 8
        %s524 = scalar_lea.vmem [#allocation7], %s523
        // Predicated region
        $region77: #{tpu_custom_call.1} parent=67 // pred_check
          %p525 = pneg %p110
        $region78: #{tpu_custom_call.1} parent=67 // pred_check_branch
          %527 = sbr.rel (%p525) target = $region80
        $region79: #{tpu_custom_call.1} parent=67 // pred_region
          %529 = dma.done %s521, 128
        $region80: #{tpu_custom_call.1} parent=67 // pred_fallthru
          _
        // Predicated region
        $region81: #{tpu_custom_call.1} parent=67 // pred_check
          %p530 = pneg %p131
        $region82: #{tpu_custom_call.1} parent=67 // pred_check_branch
          %532 = sbr.rel (%p530) target = $region84
        $region83: #{tpu_custom_call.1} parent=67 // pred_region
          %534 = dma.done [#allocation9], 256
        $region84: #{tpu_custom_call.1} parent=67 // pred_fallthru
          _
        // Predicated region
        $region85: #{tpu_custom_call.1} parent=67 // pred_check
          %p535 = pneg %p173
        $region86: #{tpu_custom_call.1} parent=67 // pred_check_branch
          %537 = sbr.rel (%p535) target = $region88
        $region87: #{tpu_custom_call.1} parent=67 // pred_region
          %539 = dma.done [#allocation9], 256
        $region88: #{tpu_custom_call.1} parent=67 // pred_fallthru
          _
        // Predicated region
        $region89: #{tpu_custom_call.1} parent=67 // pred_check
          %p540 = pneg %p215
        $region90: #{tpu_custom_call.1} parent=67 // pred_check_branch
          %542 = sbr.rel (%p540) target = $region92
        $region91: #{tpu_custom_call.1} parent=67 // pred_region
          %544 = dma.done [#allocation12], 256
        $region92: #{tpu_custom_call.1} parent=67 // pred_fallthru
          _
        // Predicated region
        $region93: #{tpu_custom_call.1} parent=67 // pred_check
          %p545 = pneg %p257
        $region94: #{tpu_custom_call.1} parent=67 // pred_check_branch
          %547 = sbr.rel (%p545) target = $region96
        $region95: #{tpu_custom_call.1} parent=67 // pred_region
          %549 = dma.done [#allocation12], 256
        $region96: #{tpu_custom_call.1} parent=67 // pred_fallthru
          _
        %s550 = sand.u32 %s291, 1
        %s551 = scalar_lea.sflag [#allocation15], %s550
        %s552 = sand.u32 %s291, 1
        %s553 = smul.addr %s552, 8
        %s554 = scalar_lea.vmem [#allocation14], %s553
        // Predicated region
        $region97: #{tpu_custom_call.1} parent=67 // pred_check
          %p555 = pneg %p304
        $region98: #{tpu_custom_call.1} parent=67 // pred_check_branch
          %557 = sbr.rel (%p555) target = $region100
        $region99: #{tpu_custom_call.1} parent=67 // pred_region
          %559 = dma.done %s551, 128
        $region100: #{tpu_custom_call.1} parent=67 // pred_fallthru
          _
        %s560 = sand.u32 %s45, 1
        %s561 = scalar_lea.sflag [#allocation3], %s560
        %s562 = sand.u32 %s45, 1
        %s563 = smul.addr %s562, 8
        %s564 = scalar_lea.vmem [#allocation2], %s563
        %p565 = pneg %p58
        %p566 = pneg %p55
        %s567 = sand.u32 %s37, 1
        %s568 = scalar_lea.sflag [#allocation6], %s567
        %s569 = sand.u32 %s71, 1
        %s570 = smul.addr %s569, 8
        %s571 = scalar_lea.vmem [#allocation5], %s570
        %p572 = pneg %p84
        %p573 = pneg %p81
        %s574 = sand.u32 %s37, 1
        %s575 = scalar_lea.sflag [#allocation6], %s574
        %s576 = sand.u32 %s97, 1
        %s577 = smul.addr %s576, 8
        %s578 = scalar_lea.vmem [#allocation7], %s577
        %p579 = pneg %p110
        %p580 = pneg %p107
        %p581 = pneg %p131
        %p582 = pneg %p128
        %p583 = pneg %p152
        %p584 = pneg %p149
        %p585 = pneg %p173
        %p586 = pneg %p170
        %p587 = pneg %p194
        %p588 = pneg %p191
        %p589 = pneg %p215
        %p590 = pneg %p212
        %p591 = pneg %p236
        %p592 = pneg %p233
        %p593 = pneg %p257
        %p594 = pneg %p254
        %p595 = pneg %p278
        %p596 = pneg %p275
        %s597 = sand.u32 %s291, 1
        %s598 = scalar_lea.sflag [#allocation15], %s597
        %s599 = sand.u32 %s291, 1
        %s600 = smul.addr %s599, 8
        %s601 = scalar_lea.vmem [#allocation14], %s600
        %p602 = pneg %p304
        %p603 = pneg %p301
        %p604 = pneg %p330
        %p605 = pneg %p327
        %s606 = sand.u32 %s317, 1
        %s607 = scalar_lea.sflag [#allocation4], %s606
        %s608 = sand.u32 %s317, 1
        %s609 = smul.addr %s608, 8
        %s610 = scalar_lea.vmem [#allocation16], %s609
        %v612 = vld [vmem:[%s504] sm:$0xff]
        %v613 = vpack.c.bf16 %v612, %v612
        %v614 = vld [vmem:[#allocation8] sm:$0xf]
        %v615 = vld [vmem:[#allocation8 + $0x4] sm:$0xf]
        %v616 = vld [vmem:[#allocation8 + $0x8] sm:$0xf]
        %v617 = vld [vmem:[#allocation8 + $0xc] sm:$0xf]
        %v618 = vld [vmem:[%s4] sm:$0x1]
        %v620 = vperm.slane %v618, 0
        %v626 = vunpack.c.l.b16 %v614
        %v627 = vunpack.c.l.b16 %v615
        %v628 = vunpack.c.l.b16 %v616
        %v629 = vunpack.c.l.b16 %v617
        %v630 = vpack.c.b16 %v627, %v626
        %v631 = vpack.c.b16 %v629, %v628
        %vm634 = vcmask 261120
        %v636 = vsel %vm634, %v613, 0
        %638 = vmatpush.bf16.msra.mxu0 0
        %639 = vmatpush.bf16.msra.mxu0 0
        %640 = vmatpush.bf16.msra.mxu0 0
        %641 = vmatpush.bf16.msra.mxu0 0
        %642 = vmatpush.bf16.msra.mxu0 0
        %643 = vmatpush.bf16.msra.mxu0 0
        %644 = vmatpush.bf16.msra.mxu0 %v631
        %645 = vmatpush.bf16.msra.mxu0 %v630
        %646 = vmatmul.bf16.gmra.mxu0 %v636
        %v647 = vpop.f32.mrf.mxu0
        %v648 = vadd.f32 %v620, %v647
        %v649 = vpop.f32.mrf.mxu0
        %650 = vdwg.mxu0
        %v651 = vld [vmem:[%s514] sm:$0xff]
        %v652 = vpack.c.bf16 %v651, %v651
        %v653 = vld [vmem:[#allocation10] sm:$0xf]
        %v654 = vld [vmem:[#allocation10 + $0x4] sm:$0xf]
        %v655 = vld [vmem:[#allocation10 + $0x8] sm:$0xf]
        %v656 = vld [vmem:[#allocation10 + $0xc] sm:$0xf]
        %v657 = vld [vmem:[%s6] sm:$0x1]
        %v659 = vperm.slane %v657, 0
        %v665 = vunpack.c.l.b16 %v653
        %v666 = vunpack.c.l.b16 %v654
        %v667 = vunpack.c.l.b16 %v655
        %v668 = vunpack.c.l.b16 %v656
        %v669 = vpack.c.b16 %v666, %v665
        %v670 = vpack.c.b16 %v668, %v667
        %v674 = vsel %vm634, %v652, 0
        %676 = vmatpush.bf16.msra.mxu0 0
        %677 = vmatpush.bf16.msra.mxu0 0
        %678 = vmatpush.bf16.msra.mxu0 0
        %679 = vmatpush.bf16.msra.mxu0 0
        %680 = vmatpush.bf16.msra.mxu0 0
        %681 = vmatpush.bf16.msra.mxu0 0
        %682 = vmatpush.bf16.msra.mxu0 %v670
        %683 = vmatpush.bf16.msra.mxu0 %v669
        %684 = vmatmul.bf16.gmra.mxu0 %v674
        %v685 = vpop.f32.mrf.mxu0
        %v686 = vadd.f32 %v659, %v685
        %v687 = vpop.f32.mrf.mxu0
        %688 = vdwg.mxu0
        %v689 = vld [vmem:[%s524] sm:$0xff]
        %v690 = vpack.c.bf16 %v689, %v689
        %v691 = vld [vmem:[#allocation11] sm:$0xf]
        %v692 = vld [vmem:[#allocation11 + $0x4] sm:$0xf]
        %v693 = vld [vmem:[#allocation11 + $0x8] sm:$0xf]
        %v694 = vld [vmem:[#allocation11 + $0xc] sm:$0xf]
        %v695 = vld [vmem:[%s8] sm:$0x1]
        %v697 = vperm.slane %v695, 0
        %v703 = vunpack.c.l.b16 %v691
        %v704 = vunpack.c.l.b16 %v692
        %v705 = vunpack.c.l.b16 %v693
        %v706 = vunpack.c.l.b16 %v694
        %v707 = vpack.c.b16 %v704, %v703
        %v708 = vpack.c.b16 %v706, %v705
        %v712 = vsel %vm634, %v690, 0
        %714 = vmatpush.bf16.msra.mxu0 0
        %715 = vmatpush.bf16.msra.mxu0 0
        %716 = vmatpush.bf16.msra.mxu0 0
        %717 = vmatpush.bf16.msra.mxu0 0
        %718 = vmatpush.bf16.msra.mxu0 0
        %719 = vmatpush.bf16.msra.mxu0 0
        %720 = vmatpush.bf16.msra.mxu0 %v708
        %721 = vmatpush.bf16.msra.mxu0 %v707
        %722 = vmatmul.bf16.gmra.mxu0 %v712
        %v723 = vpop.f32.mrf.mxu0
        %v724 = vadd.f32 %v697, %v723
        %v725 = vpop.f32.mrf.mxu0
        %726 = vdwg.mxu0
        %v727 = vld [vmem:[#allocation13] sm:$0xf]
        %v728 = vld [vmem:[#allocation13 + $0x4] sm:$0xf]
        %v729 = vld [vmem:[#allocation13 + $0x8] sm:$0xf]
        %v730 = vld [vmem:[#allocation13 + $0xc] sm:$0xf]
        %v731 = vld [vmem:[%s554] sm:$0xff]
        %v732 = vpack.c.bf16 %v648, %v648
        %v733 = vpack.c.bf16 %v686, %v686
        %v734 = vpack.c.bf16 %v724, %v724
        %vm735 = vcmask 64512
        %v737 = vsel %vm735, %v732, 0
        %v740 = vsel %vm735, %v733, 0
        %742 = vmatpush.bf16.xpose.msra.mxu0 0
        %743 = vmatpush.bf16.xpose.msra.mxu0 0
        %744 = vmatpush.bf16.xpose.msra.mxu0 0
        %745 = vmatpush.bf16.xpose.msra.mxu0 0
        %746 = vmatpush.bf16.xpose.msra.mxu0 0
        %747 = vmatpush.bf16.xpose.msra.mxu0 0
        %748 = vmatpush.bf16.xpose.msra.mxu0 0
        %749 = vmatpush.bf16.xpose.msra.mxu0 %v740
        %750 = vmatmul.bf16.gmra.mxu0 %v737
        %v751 = vpop.f32.mrf.mxu0
        %v752 = vadd.f32 0.0, %v751
        %v753 = vpop.f32.mrf.mxu0
        %754 = vdwg.mxu0
        %v755 = vmul.f32 %v752, 0.35355338
        %v756 = vadd.f32 %v755, %v731
        %v757 = vsel %vm735, %v756, -inf
        %758 = vmax.xlane.f32.xlu0 %v757
        %v759 = vpop.xlane.xlu0 %758
        %v760 = vsub.f32 %v756, %v759
        %v761 = vmul.f32 %v760, 1.442695
        %v762 = vpow.pop %v761
        %v763 = vsel %vm735, %v762, 0.0
        %764 = vadd.xlane.f32.xlu0 %v763
        %v765 = vpop.xlane.xlu0 %764
        %v766 = vrcp.pop %v765
        %v767 = vmul.f32 %v762, %v766
        %v768 = vpack.c.bf16 %v767, %v767
        %v770 = vsel %vm735, %v768, 0
        %vm772 = vcmask 1043456
        %v774 = vsel %vm772, %v734, 0
        %776 = vmatpush.bf16.msra.mxu0 0
        %777 = vmatpush.bf16.msra.mxu0 0
        %778 = vmatpush.bf16.msra.mxu0 0
        %779 = vmatpush.bf16.msra.mxu0 0
        %780 = vmatpush.bf16.msra.mxu0 0
        %781 = vmatpush.bf16.msra.mxu0 0
        %782 = vmatpush.bf16.msra.mxu0 0
        %783 = vmatpush.bf16.msra.mxu0 %v774
        %784 = vmatmul.bf16.gmra.mxu0 %v770
        %v785 = vpop.f32.mrf.mxu0
        %v786 = vadd.f32 0.0, %v785
        %v787 = vpop.f32.mrf.mxu0
        %788 = vdwg.mxu0
        %v789 = vpack.c.bf16 %v786, %v786
        %791 = vrot.lane.b32.xlu0 %v732, 120
        %v792 = vpop.permute.xlu0 %791
        %794 = vrot.lane.b32.xlu0 %v733, 120
        %v795 = vpop.permute.xlu0 %794
        %v797 = vsel %vm735, %v792, 0
        %v800 = vsel %vm735, %v795, 0
        %802 = vmatpush.bf16.xpose.msra.mxu0 0
        %803 = vmatpush.bf16.xpose.msra.mxu0 0
        %804 = vmatpush.bf16.xpose.msra.mxu0 0
        %805 = vmatpush.bf16.xpose.msra.mxu0 0
        %806 = vmatpush.bf16.xpose.msra.mxu0 0
        %807 = vmatpush.bf16.xpose.msra.mxu0 0
        %808 = vmatpush.bf16.xpose.msra.mxu0 0
        %809 = vmatpush.bf16.xpose.msra.mxu0 %v800
        %810 = vmatmul.bf16.gmra.mxu0 %v797
        %v811 = vpop.f32.mrf.mxu0
        %v812 = vadd.f32 0.0, %v811
        %v813 = vpop.f32.mrf.mxu0
        %814 = vdwg.mxu0
        %v815 = vmul.f32 %v812, 0.35355338
        %v816 = vadd.f32 %v815, %v731
        %v817 = vsel %vm735, %v816, -inf
        %818 = vmax.xlane.f32.xlu0 %v817
        %v819 = vpop.xlane.xlu0 %818
        %v820 = vsub.f32 %v816, %v819
        %v821 = vmul.f32 %v820, 1.442695
        %v822 = vpow.pop %v821
        %v823 = vsel %vm735, %v822, 0.0
        %824 = vadd.xlane.f32.xlu0 %v823
        %v825 = vpop.xlane.xlu0 %824
        %v826 = vrcp.pop %v825
        %v827 = vmul.f32 %v822, %v826
        %v828 = vpack.c.bf16 %v827, %v827
        %830 = vrot.lane.b32.xlu0 %v734, 120
        %v831 = vpop.permute.xlu0 %830
        %v833 = vsel %vm735, %v828, 0
        %v836 = vsel %vm772, %v831, 0
        %838 = vmatpush.bf16.msra.mxu0 0
        %839 = vmatpush.bf16.msra.mxu0 0
        %840 = vmatpush.bf16.msra.mxu0 0
        %841 = vmatpush.bf16.msra.mxu0 0
        %842 = vmatpush.bf16.msra.mxu0 0
        %843 = vmatpush.bf16.msra.mxu0 0
        %844 = vmatpush.bf16.msra.mxu0 0
        %845 = vmatpush.bf16.msra.mxu0 %v836
        %846 = vmatmul.bf16.gmra.mxu0 %v833
        %v847 = vpop.f32.mrf.mxu0
        %v848 = vadd.f32 0.0, %v847
        %v849 = vpop.f32.mrf.mxu0
        %850 = vdwg.mxu0
        %v851 = vpack.c.bf16 %v848, %v848
        %v853 = vsel %vm735, %v851, 0
        %v856 = vsel %vm772, %v728, 0
        %858 = vmatpush.bf16.msra.mxu0 0
        %859 = vmatpush.bf16.msra.mxu0 0
        %860 = vmatpush.bf16.msra.mxu0 0
        %861 = vmatpush.bf16.msra.mxu0 0
        %862 = vmatpush.bf16.msra.mxu0 0
        %863 = vmatpush.bf16.msra.mxu0 0
        %864 = vmatpush.bf16.msra.mxu0 0
        %865 = vmatpush.bf16.msra.mxu0 %v856
        %866 = vmatmul.bf16.gmra.mxu0 %v853
        %v867 = vpop.f32.mrf.mxu0
        %v868 = vadd.f32 0.0, %v867
        %v869 = vpop.f32.mrf.mxu0
        %870 = vdwg.mxu0
        %v872 = vsel %vm735, %v789, 0
        %v875 = vsel %vm772, %v727, 0
        %877 = vmatpush.bf16.msra.mxu0 0
        %878 = vmatpush.bf16.msra.mxu0 0
        %879 = vmatpush.bf16.msra.mxu0 0
        %880 = vmatpush.bf16.msra.mxu0 0
        %881 = vmatpush.bf16.msra.mxu0 0
        %882 = vmatpush.bf16.msra.mxu0 0
        %883 = vmatpush.bf16.msra.mxu0 0
        %884 = vmatpush.bf16.msra.mxu0 %v875
        %885 = vmatmul.bf16.gmra.mxu0 %v872
        %v886 = vpop.f32.mrf.mxu0
        %v887 = vadd.f32 %v868, %v886
        %v888 = vpop.f32.mrf.mxu0
        %889 = vdwg.mxu0
        %890 = vrot.lane.b32.xlu0 %v732, 112
        %v891 = vpop.permute.xlu0 %890
        %892 = vrot.lane.b32.xlu0 %v733, 112
        %v893 = vpop.permute.xlu0 %892
        %v895 = vsel %vm735, %v891, 0
        %v898 = vsel %vm735, %v893, 0
        %900 = vmatpush.bf16.xpose.msra.mxu0 0
        %901 = vmatpush.bf16.xpose.msra.mxu0 0
        %902 = vmatpush.bf16.xpose.msra.mxu0 0
        %903 = vmatpush.bf16.xpose.msra.mxu0 0
        %904 = vmatpush.bf16.xpose.msra.mxu0 0
        %905 = vmatpush.bf16.xpose.msra.mxu0 0
        %906 = vmatpush.bf16.xpose.msra.mxu0 0
        %907 = vmatpush.bf16.xpose.msra.mxu0 %v898
        %908 = vmatmul.bf16.gmra.mxu0 %v895
        %v909 = vpop.f32.mrf.mxu0
        %v910 = vadd.f32 0.0, %v909
        %v911 = vpop.f32.mrf.mxu0
        %912 = vdwg.mxu0
        %v913 = vmul.f32 %v910, 0.35355338
        %v914 = vadd.f32 %v913, %v731
        %v915 = vsel %vm735, %v914, -inf
        %916 = vmax.xlane.f32.xlu0 %v915
        %v917 = vpop.xlane.xlu0 %916
        %v918 = vsub.f32 %v914, %v917
        %v919 = vmul.f32 %v918, 1.442695
        %v920 = vpow.pop %v919
        %v921 = vsel %vm735, %v920, 0.0
        %922 = vadd.xlane.f32.xlu0 %v921
        %v923 = vpop.xlane.xlu0 %922
        %v924 = vrcp.pop %v923
        %v925 = vmul.f32 %v920, %v924
        %v926 = vpack.c.bf16 %v925, %v925
        %927 = vrot.lane.b32.xlu0 %v734, 112
        %v928 = vpop.permute.xlu0 %927
        %v930 = vsel %vm735, %v926, 0
        %v933 = vsel %vm772, %v928, 0
        %935 = vmatpush.bf16.msra.mxu0 0
        %936 = vmatpush.bf16.msra.mxu0 0
        %937 = vmatpush.bf16.msra.mxu0 0
        %938 = vmatpush.bf16.msra.mxu0 0
        %939 = vmatpush.bf16.msra.mxu0 0
        %940 = vmatpush.bf16.msra.mxu0 0
        %941 = vmatpush.bf16.msra.mxu0 0
        %942 = vmatpush.bf16.msra.mxu0 %v933
        %943 = vmatmul.bf16.gmra.mxu0 %v930
        %v944 = vpop.f32.mrf.mxu0
        %v945 = vadd.f32 0.0, %v944
        %v946 = vpop.f32.mrf.mxu0
        %947 = vdwg.mxu0
        %v948 = vpack.c.bf16 %v945, %v945
        %v950 = vsel %vm735, %v948, 0
        %v953 = vsel %vm772, %v729, 0
        %955 = vmatpush.bf16.msra.mxu0 0
        %956 = vmatpush.bf16.msra.mxu0 0
        %957 = vmatpush.bf16.msra.mxu0 0
        %958 = vmatpush.bf16.msra.mxu0 0
        %959 = vmatpush.bf16.msra.mxu0 0
        %960 = vmatpush.bf16.msra.mxu0 0
        %961 = vmatpush.bf16.msra.mxu0 0
        %962 = vmatpush.bf16.msra.mxu0 %v953
        %963 = vmatmul.bf16.gmra.mxu0 %v950
        %v964 = vpop.f32.mrf.mxu0
        %v965 = vadd.f32 0.0, %v964
        %v966 = vpop.f32.mrf.mxu0
        %967 = vdwg.mxu0
        %v968 = vadd.f32 %v887, %v965
        %969 = vrot.lane.b32.xlu0 %v732, 104
        %v970 = vpop.permute.xlu0 %969
        %971 = vrot.lane.b32.xlu0 %v733, 104
        %v972 = vpop.permute.xlu0 %971
        %v974 = vsel %vm735, %v970, 0
        %v977 = vsel %vm735, %v972, 0
        %979 = vmatpush.bf16.xpose.msra.mxu0 0
        %980 = vmatpush.bf16.xpose.msra.mxu0 0
        %981 = vmatpush.bf16.xpose.msra.mxu0 0
        %982 = vmatpush.bf16.xpose.msra.mxu0 0
        %983 = vmatpush.bf16.xpose.msra.mxu0 0
        %984 = vmatpush.bf16.xpose.msra.mxu0 0
        %985 = vmatpush.bf16.xpose.msra.mxu0 0
        %986 = vmatpush.bf16.xpose.msra.mxu0 %v977
        %987 = vmatmul.bf16.gmra.mxu0 %v974
        %v988 = vpop.f32.mrf.mxu0
        %v989 = vadd.f32 0.0, %v988
        %v990 = vpop.f32.mrf.mxu0
        %991 = vdwg.mxu0
        %v992 = vmul.f32 %v989, 0.35355338
        %v993 = vadd.f32 %v992, %v731
        %v994 = vsel %vm735, %v993, -inf
        %995 = vmax.xlane.f32.xlu0 %v994
        %v996 = vpop.xlane.xlu0 %995
        %v997 = vsub.f32 %v993, %v996
        %v998 = vmul.f32 %v997, 1.442695
        %v999 = vpow.pop %v998
        %v1000 = vsel %vm735, %v999, 0.0
        %1001 = vadd.xlane.f32.xlu0 %v1000
        %v1002 = vpop.xlane.xlu0 %1001
        %v1003 = vrcp.pop %v1002
        %v1004 = vmul.f32 %v999, %v1003
        %v1005 = vpack.c.bf16 %v1004, %v1004
        %1006 = vrot.lane.b32.xlu0 %v734, 104
        %v1007 = vpop.permute.xlu0 %1006
        %v1009 = vsel %vm735, %v1005, 0
        %v1012 = vsel %vm772, %v1007, 0
        %1014 = vmatpush.bf16.msra.mxu0 0
        %1015 = vmatpush.bf16.msra.mxu0 0
        %1016 = vmatpush.bf16.msra.mxu0 0
        %1017 = vmatpush.bf16.msra.mxu0 0
        %1018 = vmatpush.bf16.msra.mxu0 0
        %1019 = vmatpush.bf16.msra.mxu0 0
        %1020 = vmatpush.bf16.msra.mxu0 0
        %1021 = vmatpush.bf16.msra.mxu0 %v1012
        %1022 = vmatmul.bf16.gmra.mxu0 %v1009
        %v1023 = vpop.f32.mrf.mxu0
        %v1024 = vadd.f32 0.0, %v1023
        %v1025 = vpop.f32.mrf.mxu0
        %1026 = vdwg.mxu0
        %v1027 = vpack.c.bf16 %v1024, %v1024
        %v1029 = vsel %vm735, %v1027, 0
        %v1032 = vsel %vm772, %v730, 0
        %1034 = vmatpush.bf16.msra.mxu0 0
        %1035 = vmatpush.bf16.msra.mxu0 0
        %1036 = vmatpush.bf16.msra.mxu0 0
        %1037 = vmatpush.bf16.msra.mxu0 0
        %1038 = vmatpush.bf16.msra.mxu0 0
        %1039 = vmatpush.bf16.msra.mxu0 0
        %1040 = vmatpush.bf16.msra.mxu0 0
        %1041 = vmatpush.bf16.msra.mxu0 %v1032
        %1042 = vmatmul.bf16.gmra.mxu0 %v1029
        %v1043 = vpop.f32.mrf.mxu0
        %v1044 = vadd.f32 0.0, %v1043
        %v1045 = vpop.f32.mrf.mxu0
        %1046 = vdwg.mxu0
        %v1047 = vadd.f32 %v968, %v1044
        %v1048 = vld [vmem:[%s10] sm:$0x1]
        %v1050 = vperm.slane %v1048, 0
        %v1052 = vadd.f32 %v1047, %v1050
        %1053 = vst.msk [vmem:[%s610] sm:$0xff] %vm634, %v1052
        %s1054 = sand.u32 %s317, 1
        %s1055 = scalar_lea.sflag [#allocation4], %s1054
        %s1056 = sand.u32 %s317, 1
        %s1057 = smul.addr %s1056, 8
        %s1058 = scalar_lea.vmem [#allocation16], %s1057
        // Predicated region
        $region101: #{tpu_custom_call.1} parent=67 // pred_check
          %p1059 = pneg %p327
        $region102: #{tpu_custom_call.1} parent=67 // pred_check_branch
          %1061 = sbr.rel (%p1059) target = $region104
        $region103: #{tpu_custom_call.1} parent=67 // pred_region
          %1063 = vsyncadd %s1055, 0
          %s1064 = smul.addr %s37, 8
          %s1065 = scalar_lea.hbm %s12, %s1064
          %s1067 = sshll.u32 %s1058, 4
          %s1068 = int_to_ptr.vmem [resolvable:$true] %s1067
          %s1069 = sshll.u32 %s1065, 4
          %s1070 = int_to_ptr.hbm [resolvable:$true] %s1069
          %1072 = dma.vmem_to_hbm [thread:$0]  %s1068, 128, %s1070, %s1055
        $region104: #{tpu_custom_call.1} parent=67 // pred_fallthru
          _
      $region68: #{tpu_custom_call.1} parent=5 // pred_fallthru
        _
      %p1073 = scmp.le.s32.totalorder 2, %s32
      // Predicated region
      $region105: #{tpu_custom_call.1} parent=5 // pred_check
        %p1074 = pneg %p1073
      $region106: #{tpu_custom_call.1} parent=5 // pred_check_branch
        %1076 = sbr.rel (%p1074) target = $region108
      $region107: #{tpu_custom_call.1} parent=5 // pred_region
        %s1077 = ssub.s32 %s32, 2
        // Predicated region
        $region109: #{tpu_custom_call.1} parent=107 // pred_check
          %p1078 = pneg %p333
        $region110: #{tpu_custom_call.1} parent=107 // pred_check_branch
          %1080 = sbr.rel (%p1078) target = $region112
        $region111: #{tpu_custom_call.1} parent=107 // pred_region
          %s1081 = sand.u32 %s318, 1
          %s1082 = scalar_lea.sflag [#allocation4], %s1081
          %s1083 = sand.u32 %s318, 1
          %s1084 = smul.addr %s1083, 8
          %s1085 = scalar_lea.vmem [#allocation16], %s1084
          %1087 = dma.done %s1082, 128
        $region112: #{tpu_custom_call.1} parent=107 // pred_fallthru
          _
      $region108: #{tpu_custom_call.1} parent=5 // pred_fallthru
        _
    $region6: #{tpu_custom_call.1} parent=1 // loop_footer
      %s36 = sadd.s32 1, %s32
    $region7: #{tpu_custom_call.1} parent=1 // loop_footer_branch
      %31 = sbr.rel target = $region3
    $region8: #{tpu_custom_call.1} parent=1 // loop_exit
      _
    %1088 = vsyncpa [#allocation3], 1
    %s1089 = scalar_lea.sflag [#allocation3], 1
    %1090 = vsyncpa %s1089, 1
    %1091 = vsyncpa [#allocation6], 1
    %s1092 = scalar_lea.sflag [#allocation6], 1
    %1093 = vsyncpa %s1092, 1
    %1094 = vsyncpa [#allocation9], 1
    %1095 = vsyncpa [#allocation12], 1
    %1096 = vsyncpa [#allocation15], 1
    %s1097 = scalar_lea.sflag [#allocation15], 1
    %1098 = vsyncpa %s1097, 1
    %1099 = vsyncpa [#allocation4], 1
    %s1100 = scalar_lea.sflag [#allocation4], 1
    %1101 = vsyncpa %s1100, 1

</llo_original>
